<compile_context>
chip_gen: v7x
topology: tpu7x:2x2x1
jax: 0.10.0
libtpu: 0.0.40
codegen_flags: <defaults>
</compile_context>

<pallas_src>
import functools

import jax
import jax.numpy as jnp
from jax.experimental import pallas as pl
from jax.experimental.pallas import tpu as pltpu


# --------------------------------------------------------------------------- #
# Parameter preparation: fold conv + (1, pool_w) avg-pool into dense matrices.
# --------------------------------------------------------------------------- #

def _build_conv_pool_matrix(w, h_in, w_in, *, pad, pool_w):
    """Dense M of shape (Cin*H_in*W_in, Cout*H_out*W_pool) such that

        flatten_nchw(avg_pool2d(conv2d(x, w, padding=pad), (1, pool_w)))
            == flatten_nchw(x) @ M

    for one image x of shape (Cin, H_in, W_in).  Conv and avg-pool are both
    linear, so padding, im2col and the 1/pool_w factor are folded into the
    weights once; at run time each conv block is a single MXU matmul.
    """
    cout, cin, kh_sz, kw_sz = w.shape
    h_out = h_in + 2 * pad - kh_sz + 1
    w_out = w_in + 2 * pad - kw_sz + 1
    w_pool = w_out // pool_w

    h = jnp.arange(h_in)
    ho = jnp.arange(h_out)
    kh = h[:, None] - ho[None, :] + pad                      # (h_in, h_out)
    h_ok = (kh >= 0) & (kh < kh_sz)

    wi = jnp.arange(w_in)
    wp = jnp.arange(w_pool)
    s = jnp.arange(pool_w)
    wo = wp[:, None] * pool_w + s[None, :]                   # (w_pool, pool_w)
    kw = wi[:, None, None] - wo[None, :, :] + pad            # (w_in, w_pool, pool_w)
    w_ok = (kw >= 0) & (kw < kw_sz)

    khc = jnp.clip(kh, 0, kh_sz - 1)
    kwc = jnp.clip(kw, 0, kw_sz - 1)
    # gathered[co, ci, h, ho, wi, wp, s] = w[co, ci, kh[h,ho], kw[wi,wp,s]]
    gathered = w[:, :, khc[:, :, None, None, None], kwc[None, None, :, :, :]]
    mask = h_ok[:, :, None, None, None] & w_ok[None, None, :, :, :]
    gathered = jnp.where(mask[None, None], gathered, 0.0)
    m = gathered.sum(axis=-1) / float(pool_w)                # (co, ci, h, ho, wi, wp)
    m = jnp.transpose(m, (1, 2, 4, 0, 3, 5))                 # (ci, h, wi, co, ho, wp)
    return m.reshape(cin * h_in * w_in,
                     cout * h_out * w_pool).astype(jnp.float32)


def _pad2(a, rows, cols):
    """Zero-pad a 2-D matrix up to (rows, cols) — exact for this net."""
    return jnp.pad(a, ((0, rows - a.shape[0]), (0, cols - a.shape[1])))


def prepare_params(params):
    """PyTorch-layout params -> fused, lane-padded, bf16 matmul weights."""
    bf16 = jnp.bfloat16
    f32 = jnp.float32

    # conv1(3x3, pad=1) + avgpool(1,2):  (B,192) @ (192,640); 640 = 5*128.
    m1 = _build_conv_pool_matrix(params["conv1_w"], 8, 8, pad=1, pool_w=2)
    # conv2(3x3, pad=0) + avgpool(1,2):  (B,640) @ (640,240).  Output column
    # order is the NCHW flatten == torch's x.view(B,-1); padded 240 -> 256.
    m2 = _build_conv_pool_matrix(params["conv2_w"], 8, 4, pad=0, pool_w=2)

    w3 = params["fc1_w"].T.astype(f32)                       # (240, 120)
    w4 = params["fc2_w"].T.astype(f32)                       # (120, 50)
    w5 = params["fc3_w"].T.astype(f32)                       # (50, 1)
    b3 = params["fc1_b"].reshape(1, -1).astype(f32)
    b4 = params["fc2_b"].reshape(1, -1).astype(f32)
    b5 = params["fc3_b"].reshape(1, -1).astype(f32)

    # Matmul operands in bf16 (f32 accumulation in-kernel); biases stay f32.
    return {
        "m1": m1.astype(bf16),                               # (192, 640)
        "m2": _pad2(m2, 640, 256).astype(bf16),              # (640, 256)
        "w3": _pad2(w3, 256, 128).astype(bf16),              # (256, 128)
        "b3": _pad2(b3, 1, 128),                             # (1, 128) f32
        "w4": _pad2(w4, 128, 128).astype(bf16),              # (128, 128)
        "b4": _pad2(b4, 1, 128),                             # (1, 128) f32
        "w5": _pad2(w5, 128, 128).astype(bf16),              # (128, 128) lane-dense out
        "b5": _pad2(b5, 1, 128),                             # (1, 128) f32
    }


# --------------------------------------------------------------------------- #
# Fused Pallas kernel: whole forward pass for one batch-row tile.
# --------------------------------------------------------------------------- #

def _fused_net_kernel(x_ref, m1_ref, m2_ref, w3_ref, b3_ref, w4_ref, b4_ref,
                      w5_ref, b5_ref, o_ref):
    f32 = jnp.float32
    bf16 = jnp.bfloat16
    # conv1 + avgpool(1,2) + relu          (bf16 operands, f32 accumulate)
    a = jnp.maximum(jnp.dot(x_ref[...], m1_ref[...],
                            preferred_element_type=f32), 0.0)
    # conv2 + avgpool(1,2) + relu
    a = jnp.maximum(jnp.dot(a.astype(bf16), m2_ref[...],
                            preferred_element_type=f32), 0.0)
    # fc1 + relu  (bias add / relu in f32)
    a = jnp.maximum(jnp.dot(a.astype(bf16), w3_ref[...],
                            preferred_element_type=f32) + b3_ref[...], 0.0)
    # fc2 + relu
    a = jnp.maximum(jnp.dot(a.astype(bf16), w4_ref[...],
                            preferred_element_type=f32) + b4_ref[...], 0.0)
    # fc3 (no activation); output is lane-dense (tb, 128), real column is [:, 0]
    o_ref[...] = (jnp.dot(a.astype(bf16), w5_ref[...],
                          preferred_element_type=f32) + b5_ref[...])


def _round_up(n, m):
    return -(-n // m) * m


_ROW_ALIGN = 16                 # bf16 sublane packing: keep row tiles 16-aligned
_VMEM_LIMIT = 48 * 1024 * 1024  # > default scoped limit everywhere, < v7x 64 MiB


@functools.partial(jax.jit, static_argnames=("block_rows",))
def net_forward_prepared(x_nchw, prepped, block_rows=1024):
    b = x_nchw.shape[0]
    x2d = x_nchw.reshape(b, -1).astype(jnp.bfloat16)          # NCHW flatten: (B, 192)
    n_in = x2d.shape[1]

    b_al = _round_up(b, _ROW_ALIGN)
    tb = min(block_rows, b_al)
    # If the whole batch would be a single tile and it's big enough, split it
    # so the "parallel" grid axis has >= 2 steps (v7x: one per TensorCore).
    if tb == b_al and b_al >= 2 * _ROW_ALIGN:
        tb = _round_up(pl.cdiv(b_al, 2), _ROW_ALIGN)
    b_pad = _round_up(b_al, tb)
    if b_pad != b:
        x2d = jnp.pad(x2d, ((0, b_pad - b), (0, 0)))
    grid = (b_pad // tb,)

    w_names = ("m1", "m2", "w3", "b3", "w4", "b4", "w5", "b5")
    w_args = [prepped[k] for k in w_names]

    def resident(arr):  # full array, DMA'd once, kept resident across the grid
        return pl.BlockSpec(arr.shape, lambda i: (0, 0))

    macs_per_row = sum(int(prepped[k].shape[0] * prepped[k].shape[1])
                       for k in ("m1", "m2", "w3", "w4", "w5"))
    weight_bytes = sum(int(a.size) * a.dtype.itemsize for a in w_args)
    cost = pl.CostEstimate(
        flops=2 * b_pad * macs_per_row,
        transcendentals=0,
        bytes_accessed=(int(x2d.size) * x2d.dtype.itemsize    # bf16 input
                        + weight_bytes                         # resident weights
                        + 4 * b_pad * 128),                    # f32 lane-dense out
    )

    out = pl.pallas_call(
        _fused_net_kernel,
        out_shape=jax.ShapeDtypeStruct((b_pad, 128), jnp.float32),
        grid=grid,
        in_specs=[pl.BlockSpec((tb, n_in), lambda i: (i, 0))]
                 + [resident(a) for a in w_args],
        out_specs=pl.BlockSpec((tb, 128), lambda i: (i, 0)),
        compiler_params=pltpu.CompilerParams(
            dimension_semantics=("parallel",),   # shard batch over TensorCores
            vmem_limit_bytes=_VMEM_LIMIT),
        cost_estimate=cost,
    )(x2d, *w_args)
    return out[:b, :1]


def net_forward(x_nchw, params, block_rows=1024):
    """Convenience wrapper taking PyTorch-layout params directly."""
    return net_forward_prepared(x_nchw, prepare_params(params),
                                block_rows=block_rows)


# --------------------------------------------------------------------------- #
# Parameter init + pure-JAX reference (for a correctness sanity check).
# --------------------------------------------------------------------------- #

def init_params(key):
    def uni(k, shape, fan_in):
        bound = 1.0 / (fan_in ** 0.5)
        return jax.random.uniform(k, shape, jnp.float32, -bound, bound)

    ks = jax.random.split(key, 8)
    return {
        "conv1_w": uni(ks[0], (20, 3, 3, 3), 3 * 9),
        "conv2_w": uni(ks[1], (40, 20, 3, 3), 20 * 9),
        "fc1_w": uni(ks[2], (120, 240), 240),
        "fc1_b": uni(ks[3], (120,), 240),
        "fc2_w": uni(ks[4], (50, 120), 120),
        "fc2_b": uni(ks[5], (50,), 120),
        "fc3_w": uni(ks[6], (1, 50), 50),
        "fc3_b": uni(ks[7], (1,), 50),
    }


def _reference_forward(x_nchw, p):
    dn = ("NCHW", "OIHW", "NCHW")
    x = jax.lax.conv_general_dilated(x_nchw, p["conv1_w"], (1, 1),
                                     [(1, 1), (1, 1)], dimension_numbers=dn)
    x = jax.nn.relu(jax.lax.reduce_window(x, 0.0, jax.lax.add,
                                          (1, 1, 1, 2), (1, 1, 1, 2), "VALID") / 2.0)
    x = jax.lax.conv_general_dilated(x, p["conv2_w"], (1, 1),
                                     [(0, 0), (0, 0)], dimension_numbers=dn)
    x = jax.nn.relu(jax.lax.reduce_window(x, 0.0, jax.lax.add,
                                          (1, 1, 1, 2), (1, 1, 1, 2), "VALID") / 2.0)
    x = x.reshape(x.shape[0], -1)
    x = jax.nn.relu(x @ p["fc1_w"].T + p["fc1_b"])
    x = jax.nn.relu(x @ p["fc2_w"].T + p["fc2_b"])
    return x @ p["fc3_w"].T + p["fc3_b"]


if __name__ == "__main__":
    key = jax.random.PRNGKey(0)
    k_x, k_x2, k_p = jax.random.split(key, 3)
    params = init_params(k_p)
    prepped = prepare_params(params)   # one-time parameter prep

    # bf16 matmul operands (f32 accumulation) -> loosened tolerance vs f32 ref.
    RTOL, ATOL = 3e-2, 3e-2

    # Small demo batch (8x8 spatial input -> 240 flattened features, as fc1 implies).
    x = jax.random.normal(k_x, (2, 3, 8, 8), dtype=jnp.float32)
    out = jax.block_until_ready(net_forward_prepared(x, prepped))
    assert out.shape == (2, 1), out.shape
    ref = jax.block_until_ready(_reference_forward(x, params))
    assert jnp.allclose(out, ref, rtol=RTOL, atol=ATOL), (
        float(jnp.max(jnp.abs(out - ref))))

    # Exercise the batch grid: multiple 16-aligned row tiles + tail padding.
    x_big = jax.random.normal(k_x2, (50, 3, 8, 8), dtype=jnp.float32)
    out_big = jax.block_until_ready(
        net_forward_prepared(x_big, prepped, block_rows=16))
    ref_big = jax.block_until_ready(_reference_forward(x_big, params))
    assert out_big.shape == (50, 1), out_big.shape
    assert jnp.allclose(out_big, ref_big, rtol=RTOL, atol=ATOL), (
        float(jnp.max(jnp.abs(out_big - ref_big))))

    print("KERNEL_OK")
</pallas_src>

<mosaic_0001>
module attributes {stable_mosaic.version = 11 : i64} {
  func.func @_fused_net_kernel(%arg0: i32, %arg1: memref<16x192xbf16, #tpu.memory_space<vmem>>, %arg2: memref<192x640xbf16, #tpu.memory_space<vmem>>, %arg3: memref<640x256xbf16, #tpu.memory_space<vmem>>, %arg4: memref<256x128xbf16, #tpu.memory_space<vmem>>, %arg5: memref<1x128xf32, #tpu.memory_space<vmem>>, %arg6: memref<128x128xbf16, #tpu.memory_space<vmem>>, %arg7: memref<1x128xf32, #tpu.memory_space<vmem>>, %arg8: memref<128x128xbf16, #tpu.memory_space<vmem>>, %arg9: memref<1x128xf32, #tpu.memory_space<vmem>>, %arg10: memref<16x128xf32, #tpu.memory_space<vmem>>) attributes {dimension_semantics = [#tpu.dimension_semantics<parallel>], iteration_bounds = array<i64: 1>, scalar_prefetch = 0 : i64, scratch_operands = 0 : i64, tpu.core_type = #tpu.core_type<tc>, window_params = [{transform_indices = @transform_0, window_bounds = array<i64: 16, 192>}, {pipeline_mode = #tpu.pipeline_mode<synchronous>, transform_indices = @transform_1, window_bounds = array<i64: 192, 640>}, {pipeline_mode = #tpu.pipeline_mode<synchronous>, transform_indices = @transform_2, window_bounds = array<i64: 640, 256>}, {pipeline_mode = #tpu.pipeline_mode<synchronous>, transform_indices = @transform_3, window_bounds = array<i64: 256, 128>}, {pipeline_mode = #tpu.pipeline_mode<synchronous>, transform_indices = @transform_4, window_bounds = array<i64: 1, 128>}, {pipeline_mode = #tpu.pipeline_mode<synchronous>, transform_indices = @transform_5, window_bounds = array<i64: 128, 128>}, {pipeline_mode = #tpu.pipeline_mode<synchronous>, transform_indices = @transform_6, window_bounds = array<i64: 1, 128>}, {pipeline_mode = #tpu.pipeline_mode<synchronous>, transform_indices = @transform_7, window_bounds = array<i64: 128, 128>}, {pipeline_mode = #tpu.pipeline_mode<synchronous>, transform_indices = @transform_8, window_bounds = array<i64: 1, 128>}, {transform_indices = @transform_9, window_bounds = array<i64: 16, 128>}]} {
    %c0 = arith.constant 0 : index
    %c0_0 = arith.constant 0 : index
    %0 = vector.load %arg1[%c0, %c0_0] : memref<16x192xbf16, #tpu.memory_space<vmem>>, vector<16x192xbf16>
    %c0_1 = arith.constant 0 : index
    %c0_2 = arith.constant 0 : index
    %1 = vector.load %arg2[%c0_1, %c0_2] : memref<192x640xbf16, #tpu.memory_space<vmem>>, vector<192x640xbf16>
    %cst = arith.constant dense<0.000000e+00> : vector<16x640xf32>
    %2 = tpu.matmul %0, %1, %cst {dimension_numbers = #tpu.dot_dimension_numbers<[1], [0], [0], [1], [0, 0, 1, 1], [], []>} : vector<16x192xbf16>, vector<192x640xbf16>, vector<16x640xf32> -> vector<16x640xf32>
    %cst_3 = arith.constant 0.000000e+00 : f32
    %3 = vector.broadcast %cst_3 : f32 to vector<16x640xf32>
    %4 = arith.maximumf %2, %3 : vector<16x640xf32>
    %5 = arith.truncf %4 : vector<16x640xf32> to vector<16x640xbf16>
    %c0_4 = arith.constant 0 : index
    %c0_5 = arith.constant 0 : index
    %6 = vector.load %arg3[%c0_4, %c0_5] : memref<640x256xbf16, #tpu.memory_space<vmem>>, vector<640x256xbf16>
    %cst_6 = arith.constant dense<0.000000e+00> : vector<16x256xf32>
    %7 = tpu.matmul %5, %6, %cst_6 {dimension_numbers = #tpu.dot_dimension_numbers<[1], [0], [0], [1], [0, 0, 1, 1], [], []>} : vector<16x640xbf16>, vector<640x256xbf16>, vector<16x256xf32> -> vector<16x256xf32>
    %cst_7 = arith.constant 0.000000e+00 : f32
    %8 = vector.broadcast %cst_7 : f32 to vector<16x256xf32>
    %9 = arith.maximumf %7, %8 : vector<16x256xf32>
    %10 = arith.truncf %9 : vector<16x256xf32> to vector<16x256xbf16>
    %c0_8 = arith.constant 0 : index
    %c0_9 = arith.constant 0 : index
    %11 = vector.load %arg4[%c0_8, %c0_9] : memref<256x128xbf16, #tpu.memory_space<vmem>>, vector<256x128xbf16>
    %cst_10 = arith.constant dense<0.000000e+00> : vector<16x128xf32>
    %12 = tpu.matmul %10, %11, %cst_10 {dimension_numbers = #tpu.dot_dimension_numbers<[1], [0], [0], [1], [0, 0, 1, 1], [], []>} : vector<16x256xbf16>, vector<256x128xbf16>, vector<16x128xf32> -> vector<16x128xf32>
    %c0_11 = arith.constant 0 : index
    %c0_12 = arith.constant 0 : index
    %13 = vector.load %arg5[%c0_11, %c0_12] : memref<1x128xf32, #tpu.memory_space<vmem>>, vector<1x128xf32>
    %14 = vector.broadcast %13 : vector<1x128xf32> to vector<16x128xf32>
    %15 = arith.addf %12, %14 : vector<16x128xf32>
    %cst_13 = arith.constant 0.000000e+00 : f32
    %16 = vector.broadcast %cst_13 : f32 to vector<16x128xf32>
    %17 = arith.maximumf %15, %16 : vector<16x128xf32>
    %18 = arith.truncf %17 : vector<16x128xf32> to vector<16x128xbf16>
    %c0_14 = arith.constant 0 : index
    %c0_15 = arith.constant 0 : index
    %19 = vector.load %arg6[%c0_14, %c0_15] : memref<128x128xbf16, #tpu.memory_space<vmem>>, vector<128x128xbf16>
    %cst_16 = arith.constant dense<0.000000e+00> : vector<16x128xf32>
    %20 = tpu.matmul %18, %19, %cst_16 {dimension_numbers = #tpu.dot_dimension_numbers<[1], [0], [0], [1], [0, 0, 1, 1], [], []>} : vector<16x128xbf16>, vector<128x128xbf16>, vector<16x128xf32> -> vector<16x128xf32>
    %c0_17 = arith.constant 0 : index
    %c0_18 = arith.constant 0 : index
    %21 = vector.load %arg7[%c0_17, %c0_18] : memref<1x128xf32, #tpu.memory_space<vmem>>, vector<1x128xf32>
    %22 = vector.broadcast %21 : vector<1x128xf32> to vector<16x128xf32>
    %23 = arith.addf %20, %22 : vector<16x128xf32>
    %cst_19 = arith.constant 0.000000e+00 : f32
    %24 = vector.broadcast %cst_19 : f32 to vector<16x128xf32>
    %25 = arith.maximumf %23, %24 : vector<16x128xf32>
    %26 = arith.truncf %25 : vector<16x128xf32> to vector<16x128xbf16>
    %c0_20 = arith.constant 0 : index
    %c0_21 = arith.constant 0 : index
    %27 = vector.load %arg8[%c0_20, %c0_21] : memref<128x128xbf16, #tpu.memory_space<vmem>>, vector<128x128xbf16>
    %cst_22 = arith.constant dense<0.000000e+00> : vector<16x128xf32>
    %28 = tpu.matmul %26, %27, %cst_22 {dimension_numbers = #tpu.dot_dimension_numbers<[1], [0], [0], [1], [0, 0, 1, 1], [], []>} : vector<16x128xbf16>, vector<128x128xbf16>, vector<16x128xf32> -> vector<16x128xf32>
    %c0_23 = arith.constant 0 : index
    %c0_24 = arith.constant 0 : index
    %29 = vector.load %arg9[%c0_23, %c0_24] : memref<1x128xf32, #tpu.memory_space<vmem>>, vector<1x128xf32>
    %30 = vector.broadcast %29 : vector<1x128xf32> to vector<16x128xf32>
    %31 = arith.addf %28, %30 : vector<16x128xf32>
    %c0_25 = arith.constant 0 : index
    %c0_26 = arith.constant 0 : index
    %32 = vector.load %arg10[%c0_25, %c0_26] : memref<16x128xf32, #tpu.memory_space<vmem>>, vector<16x128xf32>
    tpu.vector_store %arg10[%c0_25, %c0_26], %31 {strides = array<i32>} : memref<16x128xf32, #tpu.memory_space<vmem>>, vector<16x128xf32>,
    return
  }
  func.func @transform_0(%arg0: i32) -> (i32, i32) {
    %c0_i32 = arith.constant 0 : i32
    %c0_i32_0 = arith.constant 0 : i32
    return %arg0, %c0_i32 : i32, i32
  }
  func.func @transform_1(%arg0: i32) -> (i32, i32) {
    %c0_i32 = arith.constant 0 : i32
    %c0_i32_0 = arith.constant 0 : i32
    %c0_i32_1 = arith.constant 0 : i32
    return %c0_i32, %c0_i32_0 : i32, i32
  }
  func.func @transform_2(%arg0: i32) -> (i32, i32) {
    %c0_i32 = arith.constant 0 : i32
    %c0_i32_0 = arith.constant 0 : i32
    %c0_i32_1 = arith.constant 0 : i32
    return %c0_i32, %c0_i32_0 : i32, i32
  }
  func.func @transform_3(%arg0: i32) -> (i32, i32) {
    %c0_i32 = arith.constant 0 : i32
    %c0_i32_0 = arith.constant 0 : i32
    %c0_i32_1 = arith.constant 0 : i32
    return %c0_i32, %c0_i32_0 : i32, i32
  }
  func.func @transform_4(%arg0: i32) -> (i32, i32) {
    %c0_i32 = arith.constant 0 : i32
    %c0_i32_0 = arith.constant 0 : i32
    %c0_i32_1 = arith.constant 0 : i32
    return %c0_i32, %c0_i32_0 : i32, i32
  }
  func.func @transform_5(%arg0: i32) -> (i32, i32) {
    %c0_i32 = arith.constant 0 : i32
    %c0_i32_0 = arith.constant 0 : i32
    %c0_i32_1 = arith.constant 0 : i32
    return %c0_i32, %c0_i32_0 : i32, i32
  }
  func.func @transform_6(%arg0: i32) -> (i32, i32) {
    %c0_i32 = arith.constant 0 : i32
    %c0_i32_0 = arith.constant 0 : i32
    %c0_i32_1 = arith.constant 0 : i32
    return %c0_i32, %c0_i32_0 : i32, i32
  }
  func.func @transform_7(%arg0: i32) -> (i32, i32) {
    %c0_i32 = arith.constant 0 : i32
    %c0_i32_0 = arith.constant 0 : i32
    %c0_i32_1 = arith.constant 0 : i32
    return %c0_i32, %c0_i32_0 : i32, i32
  }
  func.func @transform_8(%arg0: i32) -> (i32, i32) {
    %c0_i32 = arith.constant 0 : i32
    %c0_i32_0 = arith.constant 0 : i32
    %c0_i32_1 = arith.constant 0 : i32
    return %c0_i32, %c0_i32_0 : i32, i32
  }
  func.func @transform_9(%arg0: i32) -> (i32, i32) {
    %c0_i32 = arith.constant 0 : i32
    %c0_i32_0 = arith.constant 0 : i32
    return %arg0, %c0_i32 : i32, i32
  }
}

</mosaic_0001>

<llo_original>
// kernel: net_forward_prepared.1
$region0: #{net_forward_prepared.1}
  #allocation0 [shape = 'u32[]', space=smem, size = 0x4, offset = 0x4, fixed_abs, tag = 'smem constant byte address 0x4 - core index']
  #allocation1 [shape = 'u32[144,128]{1,0:T(1,128)}', space=vmem, size = 0x12000, scoped, tag = 'internal scratch']
  %s0 = inlined_call_operand.vmem [shape: bf16[16,192], index: 0, kind: input, shape index: {}]
  %s1 = inlined_call_operand.hbm [shape: bf16[192,640], index: 1, kind: input, shape index: {}]
  %s2 = inlined_call_operand.hbm [shape: bf16[640,256], index: 2, kind: input, shape index: {}]
  %s3 = inlined_call_operand.vmem [shape: bf16[256,128], index: 3, kind: input, shape index: {}]
  %s4 = inlined_call_operand.vmem [shape: f32[1,128], index: 4, kind: input, shape index: {}]
  %s5 = inlined_call_operand.hbm [shape: bf16[128,128], index: 5, kind: input, shape index: {}]
  %s6 = inlined_call_operand.vmem [shape: f32[1,128], index: 6, kind: input, shape index: {}]
  %s7 = inlined_call_operand.hbm [shape: bf16[128,128], index: 7, kind: input, shape index: {}]
  %s8 = inlined_call_operand.vmem [shape: f32[1,128], index: 8, kind: input, shape index: {}]
  %s9 = inlined_call_operand.vmem [shape: f32[16,128], index: 9, kind: output, shape index: {}]
  %s10 = sld [smem:[#allocation0]]
  $region62: #{net_forward_prepared.1} parent=0
    _
  %s12 = ssub.s32 1, %s10
  %s13 = scalar_select 0, %s12, %s10
  $region1: #{net_forward_prepared.1} parent=0
    #allocation2 [shape = 'u8[245760]{0}', space=vmem, size = 0x3c000, scoped, tag = 'input window, operand 1, single buffered']
    #allocation3 [shape = 's32[1]{0}', space=sflag, size = 0x4, scoped, tag = 'scoped memory for net_forward_prepared.1']
    #allocation4 [shape = 'u8[327680]{0}', space=vmem, size = 0x50000, scoped, tag = 'input window, operand 2, single buffered']
    #allocation5 [shape = 's32[1]{0}', space=sflag, size = 0x4, scoped, tag = 'scoped memory for net_forward_prepared.1']
    #allocation6 [shape = 'u8[32768]{0}', space=vmem, size = 0x8000, scoped, tag = 'input window, operand 5, single buffered']
    #allocation7 [shape = 'u8[32768]{0}', space=vmem, size = 0x8000, scoped, tag = 'input window, operand 7, single buffered']
    #allocation8 [shape = 's32[1]{0}', space=sflag, size = 0x4, scoped, tag = 'scoped memory for net_forward_prepared.1']
    %14 = vsyncpa [#allocation3], 0
    %15 = vsyncpa [#allocation5], 0
    %16 = vsyncpa [#allocation8], 0
    // Predicated region
    $region2: #{net_forward_prepared.1} parent=1 // pred_check
      _
    $region3: #{net_forward_prepared.1} parent=1 // pred_check_branch
      %18 = sbr.rel (0) target = $region5
    $region4: #{net_forward_prepared.1} parent=1 // pred_region
      _
    $region5: #{net_forward_prepared.1} parent=1 // pred_fallthru
      _
    // Predicated region
    $region6: #{net_forward_prepared.1} parent=1 // pred_check
      _
    $region7: #{net_forward_prepared.1} parent=1 // pred_check_branch
      %20 = sbr.rel (0) target = $region9
    $region8: #{net_forward_prepared.1} parent=1 // pred_region
      %s22 = ssub.s32 7680, 7680
      %23 = vsyncadd [#allocation3], %s22
      %s24 = sshll.u32 [#allocation2], 4
      %s25 = int_to_ptr.vmem [resolvable:$true] %s24
      %30 = dma.hbm_to_vmem [thread:$0]  %s1, 7680, %s25, [#allocation3], 320, 320, 20
    $region9: #{net_forward_prepared.1} parent=1 // pred_fallthru
      _
    // Predicated region
    $region10: #{net_forward_prepared.1} parent=1 // pred_check
      _
    $region11: #{net_forward_prepared.1} parent=1 // pred_check_branch
      %32 = sbr.rel (0) target = $region13
    $region12: #{net_forward_prepared.1} parent=1 // pred_region
      %s34 = ssub.s32 10240, 10240
      %35 = vsyncadd [#allocation5], %s34
      %s36 = sshll.u32 [#allocation4], 4
      %s37 = int_to_ptr.vmem [resolvable:$true] %s36
      %42 = dma.hbm_to_vmem [thread:$0]  %s2, 10240, %s37, [#allocation5], 128, 128, 8
    $region13: #{net_forward_prepared.1} parent=1 // pred_fallthru
      _
    // Predicated region
    $region14: #{net_forward_prepared.1} parent=1 // pred_check
      _
    $region15: #{net_forward_prepared.1} parent=1 // pred_check_branch
      %44 = sbr.rel (0) target = $region17
    $region16: #{net_forward_prepared.1} parent=1 // pred_region
      _
    $region17: #{net_forward_prepared.1} parent=1 // pred_fallthru
      _
    // Predicated region
    $region18: #{net_forward_prepared.1} parent=1 // pred_check
      _
    $region19: #{net_forward_prepared.1} parent=1 // pred_check_branch
      %46 = sbr.rel (0) target = $region21
    $region20: #{net_forward_prepared.1} parent=1 // pred_region
      _
    $region21: #{net_forward_prepared.1} parent=1 // pred_fallthru
      _
    // Predicated region
    $region22: #{net_forward_prepared.1} parent=1 // pred_check
      _
    $region23: #{net_forward_prepared.1} parent=1 // pred_check_branch
      %48 = sbr.rel (0) target = $region25
    $region24: #{net_forward_prepared.1} parent=1 // pred_region
      %s50 = ssub.s32 1024, 1024
      %51 = vsyncadd [#allocation5], %s50
      %s52 = sshll.u32 [#allocation6], 4
      %s53 = int_to_ptr.vmem [resolvable:$true] %s52
      %58 = dma.hbm_to_vmem [thread:$0]  %s5, 1024, %s53, [#allocation5], 64, 64, 4
    $region25: #{net_forward_prepared.1} parent=1 // pred_fallthru
      _
    // Predicated region
    $region26: #{net_forward_prepared.1} parent=1 // pred_check
      _
    $region27: #{net_forward_prepared.1} parent=1 // pred_check_branch
      %60 = sbr.rel (0) target = $region29
    $region28: #{net_forward_prepared.1} parent=1 // pred_region
      _
    $region29: #{net_forward_prepared.1} parent=1 // pred_fallthru
      _
    // Predicated region
    $region30: #{net_forward_prepared.1} parent=1 // pred_check
      _
    $region31: #{net_forward_prepared.1} parent=1 // pred_check_branch
      %62 = sbr.rel (0) target = $region33
    $region32: #{net_forward_prepared.1} parent=1 // pred_region
      %s64 = ssub.s32 1024, 1024
      %65 = vsyncadd [#allocation8], %s64
      %s66 = sshll.u32 [#allocation7], 4
      %s67 = int_to_ptr.vmem [resolvable:$true] %s66
      %72 = dma.hbm_to_vmem [thread:$0]  %s7, 1024, %s67, [#allocation8], 64, 64, 4
    $region33: #{net_forward_prepared.1} parent=1 // pred_fallthru
      _
    // Predicated region
    $region34: #{net_forward_prepared.1} parent=1 // pred_check
      _
    $region35: #{net_forward_prepared.1} parent=1 // pred_check_branch
      %74 = sbr.rel (0) target = $region37
    $region36: #{net_forward_prepared.1} parent=1 // pred_region
      _
    $region37: #{net_forward_prepared.1} parent=1 // pred_fallthru
      _
    // Predicated region
    $region38: #{net_forward_prepared.1} parent=1 // pred_check
      _
    $region39: #{net_forward_prepared.1} parent=1 // pred_check_branch
      %76 = sbr.rel (0) target = $region41
    $region40: #{net_forward_prepared.1} parent=1 // pred_region
      %77 = dma.done [#allocation3], 7680
    $region41: #{net_forward_prepared.1} parent=1 // pred_fallthru
      _
    // Predicated region
    $region42: #{net_forward_prepared.1} parent=1 // pred_check
      _
    $region43: #{net_forward_prepared.1} parent=1 // pred_check_branch
      %79 = sbr.rel (0) target = $region45
    $region44: #{net_forward_prepared.1} parent=1 // pred_region
      %80 = dma.done [#allocation5], 10240
    $region45: #{net_forward_prepared.1} parent=1 // pred_fallthru
      _
    // Predicated region
    $region46: #{net_forward_prepared.1} parent=1 // pred_check
      _
    $region47: #{net_forward_prepared.1} parent=1 // pred_check_branch
      %82 = sbr.rel (0) target = $region49
    $region48: #{net_forward_prepared.1} parent=1 // pred_region
      %83 = dma.done [#allocation5], 1024
    $region49: #{net_forward_prepared.1} parent=1 // pred_fallthru
      _
    // Predicated region
    $region50: #{net_forward_prepared.1} parent=1 // pred_check
      _
    $region51: #{net_forward_prepared.1} parent=1 // pred_check_branch
      %85 = sbr.rel (0) target = $region53
    $region52: #{net_forward_prepared.1} parent=1 // pred_region
      %86 = dma.done [#allocation8], 1024
    $region53: #{net_forward_prepared.1} parent=1 // pred_fallthru
      _
    %v88 = vld [vmem:[%s0] sm:$0xff]
    %v89 = vld [vmem:[%s0 + $0x8] sm:$0xff]
    %v90 = vld [vmem:[#allocation2] sm:$0xff]
    %v91 = vld [vmem:[#allocation2 + $0x8] sm:$0xff]
    %v92 = vld [vmem:[#allocation2 + $0x10] sm:$0xf]
    %v93 = vld [vmem:[#allocation2 + $0x14] sm:$0xff]
    %v94 = vld [vmem:[#allocation2 + $0x1c] sm:$0xff]
    %v95 = vld [vmem:[#allocation2 + $0x24] sm:$0xf]
    %v96 = vld [vmem:[#allocation2 + $0x28] sm:$0xff]
    %v97 = vld [vmem:[#allocation2 + $0x30] sm:$0xff]
    %v98 = vld [vmem:[#allocation2 + $0x38] sm:$0xf]
    %v99 = vld [vmem:[#allocation2 + $0x3c] sm:$0xff]
    %v100 = vld [vmem:[#allocation2 + $0x44] sm:$0xff]
    %v101 = vld [vmem:[#allocation2 + $0x4c] sm:$0xf]
    %v102 = vld [vmem:[#allocation2 + $0x50] sm:$0xff]
    %v103 = vld [vmem:[#allocation2 + $0x58] sm:$0xff]
    %v104 = vld [vmem:[#allocation2 + $0x60] sm:$0xf]
    %v105 = vld [vmem:[#allocation2 + $0x64] sm:$0xff]
    %v106 = vld [vmem:[#allocation2 + $0x6c] sm:$0xff]
    %v107 = vld [vmem:[#allocation2 + $0x74] sm:$0xf]
    %v108 = vld [vmem:[#allocation2 + $0x78] sm:$0xff]
    %v109 = vld [vmem:[#allocation2 + $0x80] sm:$0xff]
    %v110 = vld [vmem:[#allocation2 + $0x88] sm:$0xf]
    %v111 = vld [vmem:[#allocation2 + $0x8c] sm:$0xff]
    %v112 = vld [vmem:[#allocation2 + $0x94] sm:$0xff]
    %v113 = vld [vmem:[#allocation2 + $0x9c] sm:$0xf]
    %v114 = vld [vmem:[#allocation2 + $0xa0] sm:$0xff]
    %v115 = vld [vmem:[#allocation2 + $0xa8] sm:$0xff]
    %v116 = vld [vmem:[#allocation2 + $0xb0] sm:$0xf]
    %v117 = vld [vmem:[#allocation2 + $0xb4] sm:$0xff]
    %v118 = vld [vmem:[#allocation2 + $0xbc] sm:$0xff]
    %v119 = vld [vmem:[#allocation2 + $0xc4] sm:$0xf]
    %v120 = vld [vmem:[#allocation2 + $0xc8] sm:$0xff]
    %v121 = vld [vmem:[#allocation2 + $0xd0] sm:$0xff]
    %v122 = vld [vmem:[#allocation2 + $0xd8] sm:$0xf]
    %v123 = vld [vmem:[#allocation2 + $0xdc] sm:$0xff]
    %v124 = vld [vmem:[#allocation2 + $0xe4] sm:$0xff]
    %v125 = vld [vmem:[#allocation2 + $0xec] sm:$0xf]
    %v126 = vld [vmem:[#allocation2 + $0xf0] sm:$0xff]
    %v127 = vld [vmem:[#allocation2 + $0xf8] sm:$0xff]
    %v128 = vld [vmem:[#allocation2 + $0x100] sm:$0xf]
    %v129 = vld [vmem:[#allocation2 + $0x104] sm:$0xff]
    %v130 = vld [vmem:[#allocation2 + $0x10c] sm:$0xff]
    %v131 = vld [vmem:[#allocation2 + $0x114] sm:$0xf]
    %v132 = vld [vmem:[#allocation2 + $0x118] sm:$0xff]
    %v133 = vld [vmem:[#allocation2 + $0x120] sm:$0xff]
    %v134 = vld [vmem:[#allocation2 + $0x128] sm:$0xf]
    %v135 = vld [vmem:[#allocation2 + $0x12c] sm:$0xff]
    %v136 = vld [vmem:[#allocation2 + $0x134] sm:$0xff]
    %v137 = vld [vmem:[#allocation2 + $0x13c] sm:$0xf]
    %v138 = vld [vmem:[#allocation2 + $0x140] sm:$0xff]
    %v139 = vld [vmem:[#allocation2 + $0x148] sm:$0xff]
    %v140 = vld [vmem:[#allocation2 + $0x150] sm:$0xf]
    %v141 = vld [vmem:[#allocation2 + $0x154] sm:$0xff]
    %v142 = vld [vmem:[#allocation2 + $0x15c] sm:$0xff]
    %v143 = vld [vmem:[#allocation2 + $0x164] sm:$0xf]
    %v144 = vld [vmem:[#allocation2 + $0x168] sm:$0xff]
    %v145 = vld [vmem:[#allocation2 + $0x170] sm:$0xff]
    %v146 = vld [vmem:[#allocation2 + $0x178] sm:$0xf]
    %v147 = vld [vmem:[#allocation2 + $0x17c] sm:$0xff]
    %v148 = vld [vmem:[#allocation2 + $0x184] sm:$0xff]
    %v149 = vld [vmem:[#allocation2 + $0x18c] sm:$0xf]
    %v150 = vld [vmem:[#allocation2 + $0x190] sm:$0xff]
    %v151 = vld [vmem:[#allocation2 + $0x198] sm:$0xff]
    %v152 = vld [vmem:[#allocation2 + $0x1a0] sm:$0xf]
    %v153 = vld [vmem:[#allocation2 + $0x1a4] sm:$0xff]
    %v154 = vld [vmem:[#allocation2 + $0x1ac] sm:$0xff]
    %v155 = vld [vmem:[#allocation2 + $0x1b4] sm:$0xf]
    %v156 = vld [vmem:[#allocation2 + $0x1b8] sm:$0xff]
    %v157 = vld [vmem:[#allocation2 + $0x1c0] sm:$0xff]
    %v158 = vld [vmem:[#allocation2 + $0x1c8] sm:$0xf]
    %v159 = vld [vmem:[#allocation2 + $0x1cc] sm:$0xff]
    %v160 = vld [vmem:[#allocation2 + $0x1d4] sm:$0xff]
    %v161 = vld [vmem:[#allocation2 + $0x1dc] sm:$0xf]
    %v164 = vunpack.c.l.b16 %v88
    %v165 = vunpack.c.h.b16 %v88
    %v166 = vunpack.c.l.b16 %v89
    %v167 = vunpack.c.h.b16 %v89
    %v168 = vpack.c.b16 %v166, %v164
    %v169 = vpack.c.b16 %v167, %v165
    %v243 = vunpack.c.l.b16 %v90
    %v244 = vunpack.c.h.b16 %v90
    %v245 = vunpack.c.l.b16 %v91
    %v246 = vunpack.c.h.b16 %v91
    %v247 = vunpack.c.l.b16 %v92
    %v248 = vunpack.c.l.b16 %v93
    %v249 = vunpack.c.h.b16 %v93
    %v250 = vunpack.c.l.b16 %v94
    %v251 = vunpack.c.h.b16 %v94
    %v252 = vunpack.c.l.b16 %v95
    %v253 = vunpack.c.l.b16 %v96
    %v254 = vunpack.c.h.b16 %v96
    %v255 = vunpack.c.l.b16 %v97
    %v256 = vunpack.c.h.b16 %v97
    %v257 = vunpack.c.l.b16 %v98
    %v258 = vunpack.c.l.b16 %v99
    %v259 = vunpack.c.h.b16 %v99
    %v260 = vunpack.c.l.b16 %v100
    %v261 = vunpack.c.h.b16 %v100
    %v262 = vunpack.c.l.b16 %v101
    %v263 = vunpack.c.l.b16 %v102
    %v264 = vunpack.c.h.b16 %v102
    %v265 = vunpack.c.l.b16 %v103
    %v266 = vunpack.c.h.b16 %v103
    %v267 = vunpack.c.l.b16 %v104
    %v268 = vunpack.c.l.b16 %v105
    %v269 = vunpack.c.h.b16 %v105
    %v270 = vunpack.c.l.b16 %v106
    %v271 = vunpack.c.h.b16 %v106
    %v272 = vunpack.c.l.b16 %v107
    %v273 = vunpack.c.l.b16 %v108
    %v274 = vunpack.c.h.b16 %v108
    %v275 = vunpack.c.l.b16 %v109
    %v276 = vunpack.c.h.b16 %v109
    %v277 = vunpack.c.l.b16 %v110
    %v278 = vunpack.c.l.b16 %v111
    %v279 = vunpack.c.h.b16 %v111
    %v280 = vunpack.c.l.b16 %v112
    %v281 = vunpack.c.h.b16 %v112
    %v282 = vunpack.c.l.b16 %v113
    %v283 = vunpack.c.l.b16 %v114
    %v284 = vunpack.c.h.b16 %v114
    %v285 = vunpack.c.l.b16 %v115
    %v286 = vunpack.c.h.b16 %v115
    %v287 = vunpack.c.l.b16 %v116
    %v288 = vunpack.c.l.b16 %v117
    %v289 = vunpack.c.h.b16 %v117
    %v290 = vunpack.c.l.b16 %v118
    %v291 = vunpack.c.h.b16 %v118
    %v292 = vunpack.c.l.b16 %v119
    %v293 = vunpack.c.l.b16 %v120
    %v294 = vunpack.c.h.b16 %v120
    %v295 = vunpack.c.l.b16 %v121
    %v296 = vunpack.c.h.b16 %v121
    %v297 = vunpack.c.l.b16 %v122
    %v298 = vunpack.c.l.b16 %v123
    %v299 = vunpack.c.h.b16 %v123
    %v300 = vunpack.c.l.b16 %v124
    %v301 = vunpack.c.h.b16 %v124
    %v302 = vunpack.c.l.b16 %v125
    %v303 = vunpack.c.l.b16 %v126
    %v304 = vunpack.c.h.b16 %v126
    %v305 = vunpack.c.l.b16 %v127
    %v306 = vunpack.c.h.b16 %v127
    %v307 = vunpack.c.l.b16 %v128
    %v308 = vunpack.c.l.b16 %v129
    %v309 = vunpack.c.h.b16 %v129
    %v310 = vunpack.c.l.b16 %v130
    %v311 = vunpack.c.h.b16 %v130
    %v312 = vunpack.c.l.b16 %v131
    %v313 = vunpack.c.l.b16 %v132
    %v314 = vunpack.c.h.b16 %v132
    %v315 = vunpack.c.l.b16 %v133
    %v316 = vunpack.c.h.b16 %v133
    %v317 = vunpack.c.l.b16 %v134
    %v318 = vunpack.c.l.b16 %v135
    %v319 = vunpack.c.h.b16 %v135
    %v320 = vunpack.c.l.b16 %v136
    %v321 = vunpack.c.h.b16 %v136
    %v322 = vunpack.c.l.b16 %v137
    %v323 = vunpack.c.l.b16 %v138
    %v324 = vunpack.c.h.b16 %v138
    %v325 = vunpack.c.l.b16 %v139
    %v326 = vunpack.c.h.b16 %v139
    %v327 = vunpack.c.l.b16 %v140
    %v328 = vunpack.c.l.b16 %v141
    %v329 = vunpack.c.h.b16 %v141
    %v330 = vunpack.c.l.b16 %v142
    %v331 = vunpack.c.h.b16 %v142
    %v332 = vunpack.c.l.b16 %v143
    %v333 = vunpack.c.l.b16 %v144
    %v334 = vunpack.c.h.b16 %v144
    %v335 = vunpack.c.l.b16 %v145
    %v336 = vunpack.c.h.b16 %v145
    %v337 = vunpack.c.l.b16 %v146
    %v338 = vunpack.c.l.b16 %v147
    %v339 = vunpack.c.h.b16 %v147
    %v340 = vunpack.c.l.b16 %v148
    %v341 = vunpack.c.h.b16 %v148
    %v342 = vunpack.c.l.b16 %v149
    %v343 = vunpack.c.l.b16 %v150
    %v344 = vunpack.c.h.b16 %v150
    %v345 = vunpack.c.l.b16 %v151
    %v346 = vunpack.c.h.b16 %v151
    %v347 = vunpack.c.l.b16 %v152
    %v348 = vunpack.c.l.b16 %v153
    %v349 = vunpack.c.h.b16 %v153
    %v350 = vunpack.c.l.b16 %v154
    %v351 = vunpack.c.h.b16 %v154
    %v352 = vunpack.c.l.b16 %v155
    %v353 = vunpack.c.l.b16 %v156
    %v354 = vunpack.c.h.b16 %v156
    %v355 = vunpack.c.l.b16 %v157
    %v356 = vunpack.c.h.b16 %v157
    %v357 = vunpack.c.l.b16 %v158
    %v358 = vunpack.c.l.b16 %v159
    %v359 = vunpack.c.h.b16 %v159
    %v360 = vunpack.c.l.b16 %v160
    %v361 = vunpack.c.h.b16 %v160
    %v362 = vunpack.c.l.b16 %v161
    %v363 = vpack.c.b16 %v248, %v243
    %v364 = vpack.c.b16 %v249, %v244
    %v365 = vpack.c.b16 %v250, %v245
    %v366 = vpack.c.b16 %v251, %v246
    %v367 = vpack.c.b16 %v252, %v247
    %v368 = vpack.c.b16 %v258, %v253
    %v369 = vpack.c.b16 %v259, %v254
    %v370 = vpack.c.b16 %v260, %v255
    %v371 = vpack.c.b16 %v261, %v256
    %v372 = vpack.c.b16 %v262, %v257
    %v373 = vpack.c.b16 %v268, %v263
    %v374 = vpack.c.b16 %v269, %v264
    %v375 = vpack.c.b16 %v270, %v265
    %v376 = vpack.c.b16 %v271, %v266
    %v377 = vpack.c.b16 %v272, %v267
    %v378 = vpack.c.b16 %v278, %v273
    %v379 = vpack.c.b16 %v279, %v274
    %v380 = vpack.c.b16 %v280, %v275
    %v381 = vpack.c.b16 %v281, %v276
    %v382 = vpack.c.b16 %v282, %v277
    %v383 = vpack.c.b16 %v288, %v283
    %v384 = vpack.c.b16 %v289, %v284
    %v385 = vpack.c.b16 %v290, %v285
    %v386 = vpack.c.b16 %v291, %v286
    %v387 = vpack.c.b16 %v292, %v287
    %v388 = vpack.c.b16 %v298, %v293
    %v389 = vpack.c.b16 %v299, %v294
    %v390 = vpack.c.b16 %v300, %v295
    %v391 = vpack.c.b16 %v301, %v296
    %v392 = vpack.c.b16 %v302, %v297
    %v393 = vpack.c.b16 %v308, %v303
    %v394 = vpack.c.b16 %v309, %v304
    %v395 = vpack.c.b16 %v310, %v305
    %v396 = vpack.c.b16 %v311, %v306
    %v397 = vpack.c.b16 %v312, %v307
    %v398 = vpack.c.b16 %v318, %v313
    %v399 = vpack.c.b16 %v319, %v314
    %v400 = vpack.c.b16 %v320, %v315
    %v401 = vpack.c.b16 %v321, %v316
    %v402 = vpack.c.b16 %v322, %v317
    %v403 = vpack.c.b16 %v328, %v323
    %v404 = vpack.c.b16 %v329, %v324
    %v405 = vpack.c.b16 %v330, %v325
    %v406 = vpack.c.b16 %v331, %v326
    %v407 = vpack.c.b16 %v332, %v327
    %v408 = vpack.c.b16 %v338, %v333
    %v409 = vpack.c.b16 %v339, %v334
    %v410 = vpack.c.b16 %v340, %v335
    %v411 = vpack.c.b16 %v341, %v336
    %v412 = vpack.c.b16 %v342, %v337
    %v413 = vpack.c.b16 %v348, %v343
    %v414 = vpack.c.b16 %v349, %v344
    %v415 = vpack.c.b16 %v350, %v345
    %v416 = vpack.c.b16 %v351, %v346
    %v417 = vpack.c.b16 %v352, %v347
    %v418 = vpack.c.b16 %v358, %v353
    %v419 = vpack.c.b16 %v359, %v354
    %v420 = vpack.c.b16 %v360, %v355
    %v421 = vpack.c.b16 %v361, %v356
    %v422 = vpack.c.b16 %v362, %v357
    %vm483 = vcmask 523264
    %v485 = vsel %vm483, %v169, 0
    %487 = vmatprep.subr.bf16.mxu0 %v364
    %488 = vmatpush1.bf16.msra.mxu0 %v363
    %489 = vmatprep.subr.bf16.mxu0 %v369
    %490 = vmatpush1.bf16.msra.mxu0 %v368
    %491 = vmatprep.subr.bf16.mxu0 %v374
    %492 = vmatpush1.bf16.msra.mxu0 %v373
    %493 = vmatprep.subr.bf16.mxu0 %v379
    %494 = vmatpush1.bf16.msra.mxu0 %v378
    %495 = vmatprep.subr.bf16.mxu0 %v384
    %496 = vmatpush1.bf16.msra.mxu0 %v383
    %497 = vmatprep.subr.bf16.mxu0 %v389
    %498 = vmatpush1.bf16.msra.mxu0 %v388
    %499 = vmatprep.subr.bf16.mxu0 %v394
    %500 = vmatpush1.bf16.msra.mxu0 %v393
    %501 = vmatprep.subr.bf16.mxu0 %v399
    %502 = vmatpush1.bf16.msra.mxu0 %v398
    %503 = vmatprep.subr.bf16.mxu0 %v404
    %504 = vmatpush1.bf16.msra.mxu0 %v403
    %505 = vmatprep.subr.bf16.mxu0 %v409
    %506 = vmatpush1.bf16.msra.mxu0 %v408
    %507 = vmatprep.subr.bf16.mxu0 %v414
    %508 = vmatpush1.bf16.msra.mxu0 %v413
    %509 = vmatprep.subr.bf16.mxu0 %v419
    %510 = vmatpush1.bf16.msra.mxu0 %v418
    %511 = vmatprep.subr.bf16.mxu0 0
    %512 = vmatpush1.bf16.msra.mxu0 0
    %513 = vmatprep.subr.bf16.mxu0 0
    %514 = vmatpush1.bf16.msra.mxu0 0
    %515 = vmatprep.subr.bf16.mxu0 0
    %516 = vmatpush1.bf16.msra.mxu0 0
    %517 = vmatprep.subr.bf16.mxu0 0
    %518 = vmatpush1.bf16.msra.mxu0 0
    %519 = vmatprep.mubr.bf16.mxu0 %v485
    %520 = vmatmul.mubr.bf16.gmra.mrb[0].mxu0 %v168
    %v521 = vpop.f32.mrb[0].mxu0
    %v522 = vadd.f32 0.0, %v521
    %v523 = vpop.f32.mrb[0].mxu0
    %v524 = vadd.f32 0.0, %v523
    %v525 = vpop.f32.mrb[0].mxu0
    %v526 = vadd.f32 0.0, %v525
    %v527 = vpop.f32.mrb[0].mxu0
    %v528 = vadd.f32 0.0, %v527
    %529 = vdwg.mxu0
    %530 = vmatprep.subr.bf16.mxu0 %v366
    %531 = vmatpush1.bf16.msra.mxu0 %v365
    %532 = vmatprep.subr.bf16.mxu0 %v371
    %533 = vmatpush1.bf16.msra.mxu0 %v370
    %534 = vmatprep.subr.bf16.mxu0 %v376
    %535 = vmatpush1.bf16.msra.mxu0 %v375
    %536 = vmatprep.subr.bf16.mxu0 %v381
    %537 = vmatpush1.bf16.msra.mxu0 %v380
    %538 = vmatprep.subr.bf16.mxu0 %v386
    %539 = vmatpush1.bf16.msra.mxu0 %v385
    %540 = vmatprep.subr.bf16.mxu0 %v391
    %541 = vmatpush1.bf16.msra.mxu0 %v390
    %542 = vmatprep.subr.bf16.mxu0 %v396
    %543 = vmatpush1.bf16.msra.mxu0 %v395
    %544 = vmatprep.subr.bf16.mxu0 %v401
    %545 = vmatpush1.bf16.msra.mxu0 %v400
    %546 = vmatprep.subr.bf16.mxu0 %v406
    %547 = vmatpush1.bf16.msra.mxu0 %v405
    %548 = vmatprep.subr.bf16.mxu0 %v411
    %549 = vmatpush1.bf16.msra.mxu0 %v410
    %550 = vmatprep.subr.bf16.mxu0 %v416
    %551 = vmatpush1.bf16.msra.mxu0 %v415
    %552 = vmatprep.subr.bf16.mxu0 %v421
    %553 = vmatpush1.bf16.msra.mxu0 %v420
    %554 = vmatprep.subr.bf16.mxu0 0
    %555 = vmatpush1.bf16.msra.mxu0 0
    %556 = vmatprep.subr.bf16.mxu0 0
    %557 = vmatpush1.bf16.msra.mxu0 0
    %558 = vmatprep.subr.bf16.mxu0 0
    %559 = vmatpush1.bf16.msra.mxu0 0
    %560 = vmatprep.subr.bf16.mxu0 0
    %561 = vmatpush1.bf16.msra.mxu0 0
    %562 = vmatprep.mubr.bf16.mxu0 %v485
    %563 = vmatmul.mubr.bf16.gmra.mrb[0].mxu0 %v168
    %v564 = vpop.f32.mrb[0].mxu0
    %v565 = vadd.f32 0.0, %v564
    %v566 = vpop.f32.mrb[0].mxu0
    %v567 = vadd.f32 0.0, %v566
    %v568 = vpop.f32.mrb[0].mxu0
    %v569 = vadd.f32 0.0, %v568
    %v570 = vpop.f32.mrb[0].mxu0
    %v571 = vadd.f32 0.0, %v570
    %572 = vdwg.mxu0
    %573 = vmatprep.subr.bf16.mxu0 0
    %574 = vmatpush1.bf16.msra.mxu0 %v367
    %575 = vmatprep.subr.bf16.mxu0 0
    %576 = vmatpush1.bf16.msra.mxu0 %v372
    %577 = vmatprep.subr.bf16.mxu0 0
    %578 = vmatpush1.bf16.msra.mxu0 %v377
    %579 = vmatprep.subr.bf16.mxu0 0
    %580 = vmatpush1.bf16.msra.mxu0 %v382
    %581 = vmatprep.subr.bf16.mxu0 0
    %582 = vmatpush1.bf16.msra.mxu0 %v387
    %583 = vmatprep.subr.bf16.mxu0 0
    %584 = vmatpush1.bf16.msra.mxu0 %v392
    %585 = vmatprep.subr.bf16.mxu0 0
    %586 = vmatpush1.bf16.msra.mxu0 %v397
    %587 = vmatprep.subr.bf16.mxu0 0
    %588 = vmatpush1.bf16.msra.mxu0 %v402
    %589 = vmatprep.subr.bf16.mxu0 0
    %590 = vmatpush1.bf16.msra.mxu0 %v407
    %591 = vmatprep.subr.bf16.mxu0 0
    %592 = vmatpush1.bf16.msra.mxu0 %v412
    %593 = vmatprep.subr.bf16.mxu0 0
    %594 = vmatpush1.bf16.msra.mxu0 %v417
    %595 = vmatprep.subr.bf16.mxu0 0
    %596 = vmatpush1.bf16.msra.mxu0 %v422
    %597 = vmatprep.subr.bf16.mxu0 0
    %598 = vmatpush1.bf16.msra.mxu0 0
    %599 = vmatprep.subr.bf16.mxu0 0
    %600 = vmatpush1.bf16.msra.mxu0 0
    %601 = vmatprep.subr.bf16.mxu0 0
    %602 = vmatpush1.bf16.msra.mxu0 0
    %603 = vmatprep.subr.bf16.mxu0 0
    %604 = vmatpush1.bf16.msra.mxu0 0
    %605 = vmatprep.mubr.bf16.mxu0 %v485
    %606 = vmatmul.mubr.bf16.gmra.mrb[0].mxu0 %v168
    %v607 = vpop.f32.mrb[0].mxu0
    %v608 = vadd.f32 0.0, %v607
    %v609 = vpop.f32.mrb[0].mxu0
    %v610 = vpop.f32.mrb[0].mxu0
    %v611 = vadd.f32 0.0, %v610
    %v612 = vpop.f32.mrb[0].mxu0
    %613 = vdwg.mxu0
    %v614 = vmax.f32 %v522, 0.0
    %v615 = vmax.f32 %v524, 0.0
    %v616 = vmax.f32 %v565, 0.0
    %v617 = vmax.f32 %v567, 0.0
    %v618 = vmax.f32 %v608, 0.0
    %v619 = vmax.f32 %v526, 0.0
    %v620 = vmax.f32 %v528, 0.0
    %v621 = vmax.f32 %v569, 0.0
    %v622 = vmax.f32 %v571, 0.0
    %v623 = vmax.f32 %v611, 0.0
    %v624 = vpack.c.bf16 %v619, %v614
    %v625 = vpack.c.bf16 %v620, %v615
    %v626 = vpack.c.bf16 %v621, %v616
    %v627 = vpack.c.bf16 %v622, %v617
    %v628 = vpack.c.bf16 %v623, %v618
    %v629 = vld [vmem:[#allocation4] sm:$0xff]
    %v630 = vld [vmem:[#allocation4 + $0x8] sm:$0xff]
    %v631 = vld [vmem:[#allocation4 + $0x10] sm:$0xff]
    %v632 = vld [vmem:[#allocation4 + $0x18] sm:$0xff]
    %v633 = vld [vmem:[#allocation4 + $0x20] sm:$0xff]
    %v634 = vld [vmem:[#allocation4 + $0x28] sm:$0xff]
    %v635 = vld [vmem:[#allocation4 + $0x30] sm:$0xff]
    %v636 = vld [vmem:[#allocation4 + $0x38] sm:$0xff]
    %v637 = vld [vmem:[#allocation4 + $0x40] sm:$0xff]
    %v638 = vld [vmem:[#allocation4 + $0x48] sm:$0xff]
    %v639 = vld [vmem:[#allocation4 + $0x50] sm:$0xff]
    %v640 = vld [vmem:[#allocation4 + $0x58] sm:$0xff]
    %v641 = vld [vmem:[#allocation4 + $0x60] sm:$0xff]
    %v642 = vld [vmem:[#allocation4 + $0x68] sm:$0xff]
    %v643 = vld [vmem:[#allocation4 + $0x70] sm:$0xff]
    %v644 = vld [vmem:[#allocation4 + $0x78] sm:$0xff]
    %v645 = vld [vmem:[#allocation4 + $0x80] sm:$0xff]
    %v646 = vld [vmem:[#allocation4 + $0x88] sm:$0xff]
    %v647 = vld [vmem:[#allocation4 + $0x90] sm:$0xff]
    %v648 = vld [vmem:[#allocation4 + $0x98] sm:$0xff]
    %v649 = vld [vmem:[#allocation4 + $0xa0] sm:$0xff]
    %v650 = vld [vmem:[#allocation4 + $0xa8] sm:$0xff]
    %v651 = vld [vmem:[#allocation4 + $0xb0] sm:$0xff]
    %v652 = vld [vmem:[#allocation4 + $0xb8] sm:$0xff]
    %v653 = vld [vmem:[#allocation4 + $0xc0] sm:$0xff]
    %v654 = vld [vmem:[#allocation4 + $0xc8] sm:$0xff]
    %v655 = vld [vmem:[#allocation4 + $0xd0] sm:$0xff]
    %v656 = vld [vmem:[#allocation4 + $0xd8] sm:$0xff]
    %v657 = vld [vmem:[#allocation4 + $0xe0] sm:$0xff]
    %v658 = vld [vmem:[#allocation4 + $0xe8] sm:$0xff]
    %v659 = vld [vmem:[#allocation4 + $0xf0] sm:$0xff]
    %v660 = vld [vmem:[#allocation4 + $0xf8] sm:$0xff]
    %v661 = vld [vmem:[#allocation4 + $0x100] sm:$0xff]
    %v662 = vld [vmem:[#allocation4 + $0x108] sm:$0xff]
    %v663 = vld [vmem:[#allocation4 + $0x110] sm:$0xff]
    %v664 = vld [vmem:[#allocation4 + $0x118] sm:$0xff]
    %v665 = vld [vmem:[#allocation4 + $0x120] sm:$0xff]
    %v666 = vld [vmem:[#allocation4 + $0x128] sm:$0xff]
    %v667 = vld [vmem:[#allocation4 + $0x130] sm:$0xff]
    %v668 = vld [vmem:[#allocation4 + $0x138] sm:$0xff]
    %v669 = vld [vmem:[#allocation4 + $0x140] sm:$0xff]
    %v670 = vld [vmem:[#allocation4 + $0x148] sm:$0xff]
    %v671 = vld [vmem:[#allocation4 + $0x150] sm:$0xff]
    %v672 = vld [vmem:[#allocation4 + $0x158] sm:$0xff]
    %v673 = vld [vmem:[#allocation4 + $0x160] sm:$0xff]
    %v674 = vld [vmem:[#allocation4 + $0x168] sm:$0xff]
    %v675 = vld [vmem:[#allocation4 + $0x170] sm:$0xff]
    %v676 = vld [vmem:[#allocation4 + $0x178] sm:$0xff]
    %v677 = vld [vmem:[#allocation4 + $0x180] sm:$0xff]
    %v678 = vld [vmem:[#allocation4 + $0x188] sm:$0xff]
    %v679 = vld [vmem:[#allocation4 + $0x190] sm:$0xff]
    %v680 = vld [vmem:[#allocation4 + $0x198] sm:$0xff]
    %v681 = vld [vmem:[#allocation4 + $0x1a0] sm:$0xff]
    %v682 = vld [vmem:[#allocation4 + $0x1a8] sm:$0xff]
    %v683 = vld [vmem:[#allocation4 + $0x1b0] sm:$0xff]
    %v684 = vld [vmem:[#allocation4 + $0x1b8] sm:$0xff]
    %v685 = vld [vmem:[#allocation4 + $0x1c0] sm:$0xff]
    %v686 = vld [vmem:[#allocation4 + $0x1c8] sm:$0xff]
    %v687 = vld [vmem:[#allocation4 + $0x1d0] sm:$0xff]
    %v688 = vld [vmem:[#allocation4 + $0x1d8] sm:$0xff]
    %v689 = vld [vmem:[#allocation4 + $0x1e0] sm:$0xff]
    %v690 = vld [vmem:[#allocation4 + $0x1e8] sm:$0xff]
    %v691 = vld [vmem:[#allocation4 + $0x1f0] sm:$0xff]
    %v692 = vld [vmem:[#allocation4 + $0x1f8] sm:$0xff]
    %v693 = vld [vmem:[#allocation4 + $0x200] sm:$0xff]
    %v694 = vld [vmem:[#allocation4 + $0x208] sm:$0xff]
    %v695 = vld [vmem:[#allocation4 + $0x210] sm:$0xff]
    %v696 = vld [vmem:[#allocation4 + $0x218] sm:$0xff]
    %v697 = vld [vmem:[#allocation4 + $0x220] sm:$0xff]
    %v698 = vld [vmem:[#allocation4 + $0x228] sm:$0xff]
    %v699 = vld [vmem:[#allocation4 + $0x230] sm:$0xff]
    %v700 = vld [vmem:[#allocation4 + $0x238] sm:$0xff]
    %v701 = vld [vmem:[#allocation4 + $0x240] sm:$0xff]
    %v702 = vld [vmem:[#allocation4 + $0x248] sm:$0xff]
    %v703 = vld [vmem:[#allocation4 + $0x250] sm:$0xff]
    %v704 = vld [vmem:[#allocation4 + $0x258] sm:$0xff]
    %v705 = vld [vmem:[#allocation4 + $0x260] sm:$0xff]
    %v706 = vld [vmem:[#allocation4 + $0x268] sm:$0xff]
    %v707 = vld [vmem:[#allocation4 + $0x270] sm:$0xff]
    %v708 = vld [vmem:[#allocation4 + $0x278] sm:$0xff]
    %v789 = vunpack.c.l.b16 %v629
    %v790 = vunpack.c.h.b16 %v629
    %v791 = vunpack.c.l.b16 %v630
    %v792 = vunpack.c.h.b16 %v630
    %v793 = vunpack.c.l.b16 %v631
    %v794 = vunpack.c.h.b16 %v631
    %v795 = vunpack.c.l.b16 %v632
    %v796 = vunpack.c.h.b16 %v632
    %v797 = vunpack.c.l.b16 %v633
    %v798 = vunpack.c.h.b16 %v633
    %v799 = vunpack.c.l.b16 %v634
    %v800 = vunpack.c.h.b16 %v634
    %v801 = vunpack.c.l.b16 %v635
    %v802 = vunpack.c.h.b16 %v635
    %v803 = vunpack.c.l.b16 %v636
    %v804 = vunpack.c.h.b16 %v636
    %v805 = vunpack.c.l.b16 %v637
    %v806 = vunpack.c.h.b16 %v637
    %v807 = vunpack.c.l.b16 %v638
    %v808 = vunpack.c.h.b16 %v638
    %v809 = vunpack.c.l.b16 %v639
    %v810 = vunpack.c.h.b16 %v639
    %v811 = vunpack.c.l.b16 %v640
    %v812 = vunpack.c.h.b16 %v640
    %v813 = vunpack.c.l.b16 %v641
    %v814 = vunpack.c.h.b16 %v641
    %v815 = vunpack.c.l.b16 %v642
    %v816 = vunpack.c.h.b16 %v642
    %v817 = vunpack.c.l.b16 %v643
    %v818 = vunpack.c.h.b16 %v643
    %v819 = vunpack.c.l.b16 %v644
    %v820 = vunpack.c.h.b16 %v644
    %v821 = vunpack.c.l.b16 %v645
    %v822 = vunpack.c.h.b16 %v645
    %v823 = vunpack.c.l.b16 %v646
    %v824 = vunpack.c.h.b16 %v646
    %v825 = vunpack.c.l.b16 %v647
    %v826 = vunpack.c.h.b16 %v647
    %v827 = vunpack.c.l.b16 %v648
    %v828 = vunpack.c.h.b16 %v648
    %v829 = vunpack.c.l.b16 %v649
    %v830 = vunpack.c.h.b16 %v649
    %v831 = vunpack.c.l.b16 %v650
    %v832 = vunpack.c.h.b16 %v650
    %v833 = vunpack.c.l.b16 %v651
    %v834 = vunpack.c.h.b16 %v651
    %v835 = vunpack.c.l.b16 %v652
    %v836 = vunpack.c.h.b16 %v652
    %v837 = vunpack.c.l.b16 %v653
    %v838 = vunpack.c.h.b16 %v653
    %v839 = vunpack.c.l.b16 %v654
    %v840 = vunpack.c.h.b16 %v654
    %v841 = vunpack.c.l.b16 %v655
    %v842 = vunpack.c.h.b16 %v655
    %v843 = vunpack.c.l.b16 %v656
    %v844 = vunpack.c.h.b16 %v656
    %v845 = vunpack.c.l.b16 %v657
    %v846 = vunpack.c.h.b16 %v657
    %v847 = vunpack.c.l.b16 %v658
    %v848 = vunpack.c.h.b16 %v658
    %v849 = vunpack.c.l.b16 %v659
    %v850 = vunpack.c.h.b16 %v659
    %v851 = vunpack.c.l.b16 %v660
    %v852 = vunpack.c.h.b16 %v660
    %v853 = vunpack.c.l.b16 %v661
    %v854 = vunpack.c.h.b16 %v661
    %v855 = vunpack.c.l.b16 %v662
    %v856 = vunpack.c.h.b16 %v662
    %v857 = vunpack.c.l.b16 %v663
    %v858 = vunpack.c.h.b16 %v663
    %v859 = vunpack.c.l.b16 %v664
    %v860 = vunpack.c.h.b16 %v664
    %v861 = vunpack.c.l.b16 %v665
    %v862 = vunpack.c.h.b16 %v665
    %v863 = vunpack.c.l.b16 %v666
    %v864 = vunpack.c.h.b16 %v666
    %v865 = vunpack.c.l.b16 %v667
    %v866 = vunpack.c.h.b16 %v667
    %v867 = vunpack.c.l.b16 %v668
    %v868 = vunpack.c.h.b16 %v668
    %v869 = vunpack.c.l.b16 %v669
    %v870 = vunpack.c.h.b16 %v669
    %v871 = vunpack.c.l.b16 %v670
    %v872 = vunpack.c.h.b16 %v670
    %v873 = vunpack.c.l.b16 %v671
    %v874 = vunpack.c.h.b16 %v671
    %v875 = vunpack.c.l.b16 %v672
    %v876 = vunpack.c.h.b16 %v672
    %v877 = vunpack.c.l.b16 %v673
    %v878 = vunpack.c.h.b16 %v673
    %v879 = vunpack.c.l.b16 %v674
    %v880 = vunpack.c.h.b16 %v674
    %v881 = vunpack.c.l.b16 %v675
    %v882 = vunpack.c.h.b16 %v675
    %v883 = vunpack.c.l.b16 %v676
    %v884 = vunpack.c.h.b16 %v676
    %v885 = vunpack.c.l.b16 %v677
    %v886 = vunpack.c.h.b16 %v677
    %v887 = vunpack.c.l.b16 %v678
    %v888 = vunpack.c.h.b16 %v678
    %v889 = vunpack.c.l.b16 %v679
    %v890 = vunpack.c.h.b16 %v679
    %v891 = vunpack.c.l.b16 %v680
    %v892 = vunpack.c.h.b16 %v680
    %v893 = vunpack.c.l.b16 %v681
    %v894 = vunpack.c.h.b16 %v681
    %v895 = vunpack.c.l.b16 %v682
    %v896 = vunpack.c.h.b16 %v682
    %v897 = vunpack.c.l.b16 %v683
    %v898 = vunpack.c.h.b16 %v683
    %v899 = vunpack.c.l.b16 %v684
    %v900 = vunpack.c.h.b16 %v684
    %v901 = vunpack.c.l.b16 %v685
    %v902 = vunpack.c.h.b16 %v685
    %v903 = vunpack.c.l.b16 %v686
    %v904 = vunpack.c.h.b16 %v686
    %v905 = vunpack.c.l.b16 %v687
    %v906 = vunpack.c.h.b16 %v687
    %v907 = vunpack.c.l.b16 %v688
    %v908 = vunpack.c.h.b16 %v688
    %v909 = vunpack.c.l.b16 %v689
    %v910 = vunpack.c.h.b16 %v689
    %v911 = vunpack.c.l.b16 %v690
    %v912 = vunpack.c.h.b16 %v690
    %v913 = vunpack.c.l.b16 %v691
    %v914 = vunpack.c.h.b16 %v691
    %v915 = vunpack.c.l.b16 %v692
    %v916 = vunpack.c.h.b16 %v692
    %v917 = vunpack.c.l.b16 %v693
    %v918 = vunpack.c.h.b16 %v693
    %v919 = vunpack.c.l.b16 %v694
    %v920 = vunpack.c.h.b16 %v694
    %v921 = vunpack.c.l.b16 %v695
    %v922 = vunpack.c.h.b16 %v695
    %v923 = vunpack.c.l.b16 %v696
    %v924 = vunpack.c.h.b16 %v696
    %v925 = vunpack.c.l.b16 %v697
    %v926 = vunpack.c.h.b16 %v697
    %v927 = vunpack.c.l.b16 %v698
    %v928 = vunpack.c.h.b16 %v698
    %v929 = vunpack.c.l.b16 %v699
    %v930 = vunpack.c.h.b16 %v699
    %v931 = vunpack.c.l.b16 %v700
    %v932 = vunpack.c.h.b16 %v700
    %v933 = vunpack.c.l.b16 %v701
    %v934 = vunpack.c.h.b16 %v701
    %v935 = vunpack.c.l.b16 %v702
    %v936 = vunpack.c.h.b16 %v702
    %v937 = vunpack.c.l.b16 %v703
    %v938 = vunpack.c.h.b16 %v703
    %v939 = vunpack.c.l.b16 %v704
    %v940 = vunpack.c.h.b16 %v704
    %v941 = vunpack.c.l.b16 %v705
    %v942 = vunpack.c.h.b16 %v705
    %v943 = vunpack.c.l.b16 %v706
    %v944 = vunpack.c.h.b16 %v706
    %v945 = vunpack.c.l.b16 %v707
    %v946 = vunpack.c.h.b16 %v707
    %v947 = vunpack.c.l.b16 %v708
    %v948 = vunpack.c.h.b16 %v708
    %v949 = vpack.c.b16 %v791, %v789
    %v950 = vpack.c.b16 %v792, %v790
    %v951 = vpack.c.b16 %v795, %v793
    %v952 = vpack.c.b16 %v796, %v794
    %v953 = vpack.c.b16 %v799, %v797
    %v954 = vpack.c.b16 %v800, %v798
    %v955 = vpack.c.b16 %v803, %v801
    %v956 = vpack.c.b16 %v804, %v802
    %v957 = vpack.c.b16 %v807, %v805
    %v958 = vpack.c.b16 %v808, %v806
    %v959 = vpack.c.b16 %v811, %v809
    %v960 = vpack.c.b16 %v812, %v810
    %v961 = vpack.c.b16 %v815, %v813
    %v962 = vpack.c.b16 %v816, %v814
    %v963 = vpack.c.b16 %v819, %v817
    %v964 = vpack.c.b16 %v820, %v818
    %v965 = vpack.c.b16 %v823, %v821
    %v966 = vpack.c.b16 %v824, %v822
    %v967 = vpack.c.b16 %v827, %v825
    %v968 = vpack.c.b16 %v828, %v826
    %v969 = vpack.c.b16 %v831, %v829
    %v970 = vpack.c.b16 %v832, %v830
    %v971 = vpack.c.b16 %v835, %v833
    %v972 = vpack.c.b16 %v836, %v834
    %v973 = vpack.c.b16 %v839, %v837
    %v974 = vpack.c.b16 %v840, %v838
    %v975 = vpack.c.b16 %v843, %v841
    %v976 = vpack.c.b16 %v844, %v842
    %v977 = vpack.c.b16 %v847, %v845
    %v978 = vpack.c.b16 %v848, %v846
    %v979 = vpack.c.b16 %v851, %v849
    %v980 = vpack.c.b16 %v852, %v850
    %v981 = vpack.c.b16 %v855, %v853
    %v982 = vpack.c.b16 %v856, %v854
    %v983 = vpack.c.b16 %v859, %v857
    %v984 = vpack.c.b16 %v860, %v858
    %v985 = vpack.c.b16 %v863, %v861
    %v986 = vpack.c.b16 %v864, %v862
    %v987 = vpack.c.b16 %v867, %v865
    %v988 = vpack.c.b16 %v868, %v866
    %v989 = vpack.c.b16 %v871, %v869
    %v990 = vpack.c.b16 %v872, %v870
    %v991 = vpack.c.b16 %v875, %v873
    %v992 = vpack.c.b16 %v876, %v874
    %v993 = vpack.c.b16 %v879, %v877
    %v994 = vpack.c.b16 %v880, %v878
    %v995 = vpack.c.b16 %v883, %v881
    %v996 = vpack.c.b16 %v884, %v882
    %v997 = vpack.c.b16 %v887, %v885
    %v998 = vpack.c.b16 %v888, %v886
    %v999 = vpack.c.b16 %v891, %v889
    %v1000 = vpack.c.b16 %v892, %v890
    %v1001 = vpack.c.b16 %v895, %v893
    %v1002 = vpack.c.b16 %v896, %v894
    %v1003 = vpack.c.b16 %v899, %v897
    %v1004 = vpack.c.b16 %v900, %v898
    %v1005 = vpack.c.b16 %v903, %v901
    %v1006 = vpack.c.b16 %v904, %v902
    %v1007 = vpack.c.b16 %v907, %v905
    %v1008 = vpack.c.b16 %v908, %v906
    %v1009 = vpack.c.b16 %v911, %v909
    %v1010 = vpack.c.b16 %v912, %v910
    %v1011 = vpack.c.b16 %v915, %v913
    %v1012 = vpack.c.b16 %v916, %v914
    %v1013 = vpack.c.b16 %v919, %v917
    %v1014 = vpack.c.b16 %v920, %v918
    %v1015 = vpack.c.b16 %v923, %v921
    %v1016 = vpack.c.b16 %v924, %v922
    %v1017 = vpack.c.b16 %v927, %v925
    %v1018 = vpack.c.b16 %v928, %v926
    %v1019 = vpack.c.b16 %v931, %v929
    %v1020 = vpack.c.b16 %v932, %v930
    %v1021 = vpack.c.b16 %v935, %v933
    %v1022 = vpack.c.b16 %v936, %v934
    %v1023 = vpack.c.b16 %v939, %v937
    %v1024 = vpack.c.b16 %v940, %v938
    %v1025 = vpack.c.b16 %v943, %v941
    %v1026 = vpack.c.b16 %v944, %v942
    %v1027 = vpack.c.b16 %v947, %v945
    %v1028 = vpack.c.b16 %v948, %v946
    %1109 = vmatprep.subr.bf16.mxu0 %v950
    %1110 = vmatpush1.bf16.msra.mxu0 %v949
    %1111 = vmatprep.subr.bf16.mxu0 %v952
    %1112 = vmatpush1.bf16.msra.mxu0 %v951
    %1113 = vmatprep.subr.bf16.mxu0 %v954
    %1114 = vmatpush1.bf16.msra.mxu0 %v953
    %1115 = vmatprep.subr.bf16.mxu0 %v956
    %1116 = vmatpush1.bf16.msra.mxu0 %v955
    %1117 = vmatprep.subr.bf16.mxu0 %v958
    %1118 = vmatpush1.bf16.msra.mxu0 %v957
    %1119 = vmatprep.subr.bf16.mxu0 %v960
    %1120 = vmatpush1.bf16.msra.mxu0 %v959
    %1121 = vmatprep.subr.bf16.mxu0 %v962
    %1122 = vmatpush1.bf16.msra.mxu0 %v961
    %1123 = vmatprep.subr.bf16.mxu0 %v964
    %1124 = vmatpush1.bf16.msra.mxu0 %v963
    %1125 = vmatprep.subr.bf16.mxu0 %v966
    %1126 = vmatpush1.bf16.msra.mxu0 %v965
    %1127 = vmatprep.subr.bf16.mxu0 %v968
    %1128 = vmatpush1.bf16.msra.mxu0 %v967
    %1129 = vmatprep.subr.bf16.mxu0 %v970
    %1130 = vmatpush1.bf16.msra.mxu0 %v969
    %1131 = vmatprep.subr.bf16.mxu0 %v972
    %1132 = vmatpush1.bf16.msra.mxu0 %v971
    %1133 = vmatprep.subr.bf16.mxu0 %v974
    %1134 = vmatpush1.bf16.msra.mxu0 %v973
    %1135 = vmatprep.subr.bf16.mxu0 %v976
    %1136 = vmatpush1.bf16.msra.mxu0 %v975
    %1137 = vmatprep.subr.bf16.mxu0 %v978
    %1138 = vmatpush1.bf16.msra.mxu0 %v977
    %1139 = vmatprep.subr.bf16.mxu0 %v980
    %1140 = vmatpush1.bf16.msra.mxu0 %v979
    %1141 = vmatprep.mubr.bf16.mxu0 %v625
    %1142 = vmatmul.mubr.bf16.gmra.mrb[0].mxu0 %v624
    %v1143 = vpop.f32.mrb[0].mxu0
    %v1144 = vadd.f32 0.0, %v1143
    %v1145 = vpop.f32.mrb[0].mxu0
    %v1146 = vadd.f32 0.0, %v1145
    %v1147 = vpop.f32.mrb[0].mxu0
    %v1148 = vadd.f32 0.0, %v1147
    %v1149 = vpop.f32.mrb[0].mxu0
    %v1150 = vadd.f32 0.0, %v1149
    %1151 = vdwg.mxu0
    %1152 = vmatprep.subr.bf16.mxu0 %v982
    %1153 = vmatpush1.bf16.msra.mxu0 %v981
    %1154 = vmatprep.subr.bf16.mxu0 %v984
    %1155 = vmatpush1.bf16.msra.mxu0 %v983
    %1156 = vmatprep.subr.bf16.mxu0 %v986
    %1157 = vmatpush1.bf16.msra.mxu0 %v985
    %1158 = vmatprep.subr.bf16.mxu0 %v988
    %1159 = vmatpush1.bf16.msra.mxu0 %v987
    %1160 = vmatprep.subr.bf16.mxu0 %v990
    %1161 = vmatpush1.bf16.msra.mxu0 %v989
    %1162 = vmatprep.subr.bf16.mxu0 %v992
    %1163 = vmatpush1.bf16.msra.mxu0 %v991
    %1164 = vmatprep.subr.bf16.mxu0 %v994
    %1165 = vmatpush1.bf16.msra.mxu0 %v993
    %1166 = vmatprep.subr.bf16.mxu0 %v996
    %1167 = vmatpush1.bf16.msra.mxu0 %v995
    %1168 = vmatprep.subr.bf16.mxu0 %v998
    %1169 = vmatpush1.bf16.msra.mxu0 %v997
    %1170 = vmatprep.subr.bf16.mxu0 %v1000
    %1171 = vmatpush1.bf16.msra.mxu0 %v999
    %1172 = vmatprep.subr.bf16.mxu0 %v1002
    %1173 = vmatpush1.bf16.msra.mxu0 %v1001
    %1174 = vmatprep.subr.bf16.mxu0 %v1004
    %1175 = vmatpush1.bf16.msra.mxu0 %v1003
    %1176 = vmatprep.subr.bf16.mxu0 %v1006
    %1177 = vmatpush1.bf16.msra.mxu0 %v1005
    %1178 = vmatprep.subr.bf16.mxu0 %v1008
    %1179 = vmatpush1.bf16.msra.mxu0 %v1007
    %1180 = vmatprep.subr.bf16.mxu0 %v1010
    %1181 = vmatpush1.bf16.msra.mxu0 %v1009
    %1182 = vmatprep.subr.bf16.mxu0 %v1012
    %1183 = vmatpush1.bf16.msra.mxu0 %v1011
    %1184 = vmatprep.mubr.bf16.mxu0 %v627
    %1185 = vmatmul.mubr.bf16.gmra.mrb[0].mxu0 %v626
    %v1186 = vpop.f32.mrb[0].mxu0
    %v1187 = vadd.f32 %v1144, %v1186
    %v1188 = vpop.f32.mrb[0].mxu0
    %v1189 = vadd.f32 %v1146, %v1188
    %v1190 = vpop.f32.mrb[0].mxu0
    %v1191 = vadd.f32 %v1148, %v1190
    %v1192 = vpop.f32.mrb[0].mxu0
    %v1193 = vadd.f32 %v1150, %v1192
    %1194 = vdwg.mxu0
    %1195 = vmatprep.subr.bf16.mxu0 %v1014
    %1196 = vmatpush1.bf16.msra.mxu0 %v1013
    %1197 = vmatprep.subr.bf16.mxu0 %v1016
    %1198 = vmatpush1.bf16.msra.mxu0 %v1015
    %1199 = vmatprep.subr.bf16.mxu0 %v1018
    %1200 = vmatpush1.bf16.msra.mxu0 %v1017
    %1201 = vmatprep.subr.bf16.mxu0 %v1020
    %1202 = vmatpush1.bf16.msra.mxu0 %v1019
    %1203 = vmatprep.subr.bf16.mxu0 %v1022
    %1204 = vmatpush1.bf16.msra.mxu0 %v1021
    %1205 = vmatprep.subr.bf16.mxu0 %v1024
    %1206 = vmatpush1.bf16.msra.mxu0 %v1023
    %1207 = vmatprep.subr.bf16.mxu0 %v1026
    %1208 = vmatpush1.bf16.msra.mxu0 %v1025
    %1209 = vmatprep.subr.bf16.mxu0 %v1028
    %1210 = vmatpush1.bf16.msra.mxu0 %v1027
    %1211 = vmatprep.subr.bf16.mxu0 0
    %1212 = vmatpush1.bf16.msra.mxu0 0
    %1213 = vmatprep.subr.bf16.mxu0 0
    %1214 = vmatpush1.bf16.msra.mxu0 0
    %1215 = vmatprep.subr.bf16.mxu0 0
    %1216 = vmatpush1.bf16.msra.mxu0 0
    %1217 = vmatprep.subr.bf16.mxu0 0
    %1218 = vmatpush1.bf16.msra.mxu0 0
    %1219 = vmatprep.subr.bf16.mxu0 0
    %1220 = vmatpush1.bf16.msra.mxu0 0
    %1221 = vmatprep.subr.bf16.mxu0 0
    %1222 = vmatpush1.bf16.msra.mxu0 0
    %1223 = vmatprep.subr.bf16.mxu0 0
    %1224 = vmatpush1.bf16.msra.mxu0 0
    %1225 = vmatprep.subr.bf16.mxu0 0
    %1226 = vmatpush1.bf16.msra.mxu0 0
    %1227 = vmatprep.mubr.bf16.mxu0 0
    %1228 = vmatmul.mubr.bf16.gmra.mrb[0].mxu0 %v628
    %v1229 = vpop.f32.mrb[0].mxu0
    %v1230 = vadd.f32 %v1187, %v1229
    %v1231 = vpop.f32.mrb[0].mxu0
    %v1232 = vadd.f32 %v1189, %v1231
    %v1233 = vpop.f32.mrb[0].mxu0
    %v1234 = vadd.f32 %v1191, %v1233
    %v1235 = vpop.f32.mrb[0].mxu0
    %v1236 = vadd.f32 %v1193, %v1235
    %1237 = vdwg.mxu0
    %v1238 = vmax.f32 %v1230, 0.0
    %v1239 = vmax.f32 %v1232, 0.0
    %v1240 = vmax.f32 %v1234, 0.0
    %v1241 = vmax.f32 %v1236, 0.0
    %v1242 = vpack.c.bf16 %v1240, %v1238
    %v1243 = vpack.c.bf16 %v1241, %v1239
    %v1244 = vld [vmem:[%s3] sm:$0xf]
    %v1245 = vld [vmem:[%s3 + $0x4] sm:$0xf]
    %v1246 = vld [vmem:[%s3 + $0x8] sm:$0xf]
    %v1247 = vld [vmem:[%s3 + $0xc] sm:$0xf]
    %v1248 = vld [vmem:[%s3 + $0x10] sm:$0xf]
    %v1249 = vld [vmem:[%s3 + $0x14] sm:$0xf]
    %v1250 = vld [vmem:[%s3 + $0x18] sm:$0xf]
    %v1251 = vld [vmem:[%s3 + $0x1c] sm:$0xf]
    %v1252 = vld [vmem:[%s3 + $0x20] sm:$0xf]
    %v1253 = vld [vmem:[%s3 + $0x24] sm:$0xf]
    %v1254 = vld [vmem:[%s3 + $0x28] sm:$0xf]
    %v1255 = vld [vmem:[%s3 + $0x2c] sm:$0xf]
    %v1256 = vld [vmem:[%s3 + $0x30] sm:$0xf]
    %v1257 = vld [vmem:[%s3 + $0x34] sm:$0xf]
    %v1258 = vld [vmem:[%s3 + $0x38] sm:$0xf]
    %v1259 = vld [vmem:[%s3 + $0x3c] sm:$0xf]
    %v1260 = vld [vmem:[%s3 + $0x40] sm:$0xf]
    %v1261 = vld [vmem:[%s3 + $0x44] sm:$0xf]
    %v1262 = vld [vmem:[%s3 + $0x48] sm:$0xf]
    %v1263 = vld [vmem:[%s3 + $0x4c] sm:$0xf]
    %v1264 = vld [vmem:[%s3 + $0x50] sm:$0xf]
    %v1265 = vld [vmem:[%s3 + $0x54] sm:$0xf]
    %v1266 = vld [vmem:[%s3 + $0x58] sm:$0xf]
    %v1267 = vld [vmem:[%s3 + $0x5c] sm:$0xf]
    %v1268 = vld [vmem:[%s3 + $0x60] sm:$0xf]
    %v1269 = vld [vmem:[%s3 + $0x64] sm:$0xf]
    %v1270 = vld [vmem:[%s3 + $0x68] sm:$0xf]
    %v1271 = vld [vmem:[%s3 + $0x6c] sm:$0xf]
    %v1272 = vld [vmem:[%s3 + $0x70] sm:$0xf]
    %v1273 = vld [vmem:[%s3 + $0x74] sm:$0xf]
    %v1274 = vld [vmem:[%s3 + $0x78] sm:$0xf]
    %v1275 = vld [vmem:[%s3 + $0x7c] sm:$0xf]
    %v1276 = vld [vmem:[%s4] sm:$0x1]
    %v1278 = vlaneseq
    %v1279 = vshrl.u32 %v1278, 7
    %v1280 = vsub.s32 0, %v1279
    %v1281 = vrot.slane %v1276, %v1280
    %v1315 = vunpack.c.l.b16 %v1244
    %v1316 = vunpack.c.l.b16 %v1245
    %v1317 = vunpack.c.l.b16 %v1246
    %v1318 = vunpack.c.l.b16 %v1247
    %v1319 = vunpack.c.l.b16 %v1248
    %v1320 = vunpack.c.l.b16 %v1249
    %v1321 = vunpack.c.l.b16 %v1250
    %v1322 = vunpack.c.l.b16 %v1251
    %v1323 = vunpack.c.l.b16 %v1252
    %v1324 = vunpack.c.l.b16 %v1253
    %v1325 = vunpack.c.l.b16 %v1254
    %v1326 = vunpack.c.l.b16 %v1255
    %v1327 = vunpack.c.l.b16 %v1256
    %v1328 = vunpack.c.l.b16 %v1257
    %v1329 = vunpack.c.l.b16 %v1258
    %v1330 = vunpack.c.l.b16 %v1259
    %v1331 = vunpack.c.l.b16 %v1260
    %v1332 = vunpack.c.l.b16 %v1261
    %v1333 = vunpack.c.l.b16 %v1262
    %v1334 = vunpack.c.l.b16 %v1263
    %v1335 = vunpack.c.l.b16 %v1264
    %v1336 = vunpack.c.l.b16 %v1265
    %v1337 = vunpack.c.l.b16 %v1266
    %v1338 = vunpack.c.l.b16 %v1267
    %v1339 = vunpack.c.l.b16 %v1268
    %v1340 = vunpack.c.l.b16 %v1269
    %v1341 = vunpack.c.l.b16 %v1270
    %v1342 = vunpack.c.l.b16 %v1271
    %v1343 = vunpack.c.l.b16 %v1272
    %v1344 = vunpack.c.l.b16 %v1273
    %v1345 = vunpack.c.l.b16 %v1274
    %v1346 = vunpack.c.l.b16 %v1275
    %v1347 = vpack.c.b16 %v1316, %v1315
    %v1348 = vpack.c.b16 %v1318, %v1317
    %v1349 = vpack.c.b16 %v1320, %v1319
    %v1350 = vpack.c.b16 %v1322, %v1321
    %v1351 = vpack.c.b16 %v1324, %v1323
    %v1352 = vpack.c.b16 %v1326, %v1325
    %v1353 = vpack.c.b16 %v1328, %v1327
    %v1354 = vpack.c.b16 %v1330, %v1329
    %v1355 = vpack.c.b16 %v1332, %v1331
    %v1356 = vpack.c.b16 %v1334, %v1333
    %v1357 = vpack.c.b16 %v1336, %v1335
    %v1358 = vpack.c.b16 %v1338, %v1337
    %v1359 = vpack.c.b16 %v1340, %v1339
    %v1360 = vpack.c.b16 %v1342, %v1341
    %v1361 = vpack.c.b16 %v1344, %v1343
    %v1362 = vpack.c.b16 %v1346, %v1345
    %1379 = vmatprep.subr.bf16.mxu0 0
    %1380 = vmatpush1.bf16.msra.mxu0 %v1347
    %1381 = vmatprep.subr.bf16.mxu0 0
    %1382 = vmatpush1.bf16.msra.mxu0 %v1348
    %1383 = vmatprep.subr.bf16.mxu0 0
    %1384 = vmatpush1.bf16.msra.mxu0 %v1349
    %1385 = vmatprep.subr.bf16.mxu0 0
    %1386 = vmatpush1.bf16.msra.mxu0 %v1350
    %1387 = vmatprep.subr.bf16.mxu0 0
    %1388 = vmatpush1.bf16.msra.mxu0 %v1351
    %1389 = vmatprep.subr.bf16.mxu0 0
    %1390 = vmatpush1.bf16.msra.mxu0 %v1352
    %1391 = vmatprep.subr.bf16.mxu0 0
    %1392 = vmatpush1.bf16.msra.mxu0 %v1353
    %1393 = vmatprep.subr.bf16.mxu0 0
    %1394 = vmatpush1.bf16.msra.mxu0 %v1354
    %1395 = vmatprep.subr.bf16.mxu0 0
    %1396 = vmatpush1.bf16.msra.mxu0 %v1355
    %1397 = vmatprep.subr.bf16.mxu0 0
    %1398 = vmatpush1.bf16.msra.mxu0 %v1356
    %1399 = vmatprep.subr.bf16.mxu0 0
    %1400 = vmatpush1.bf16.msra.mxu0 %v1357
    %1401 = vmatprep.subr.bf16.mxu0 0
    %1402 = vmatpush1.bf16.msra.mxu0 %v1358
    %1403 = vmatprep.subr.bf16.mxu0 0
    %1404 = vmatpush1.bf16.msra.mxu0 %v1359
    %1405 = vmatprep.subr.bf16.mxu0 0
    %1406 = vmatpush1.bf16.msra.mxu0 %v1360
    %1407 = vmatprep.subr.bf16.mxu0 0
    %1408 = vmatpush1.bf16.msra.mxu0 %v1361
    %1409 = vmatprep.subr.bf16.mxu0 0
    %1410 = vmatpush1.bf16.msra.mxu0 %v1362
    %1411 = vmatprep.mubr.bf16.mxu0 %v1243
    %1412 = vmatmul.mubr.bf16.gmra.mrb[0].mxu0 %v1242
    %v1413 = vpop.f32.mrb[0].mxu0
    %v1414 = vadd.f32 %v1281, %v1413
    %v1415 = vpop.f32.mrb[0].mxu0
    %v1416 = vpop.f32.mrb[0].mxu0
    %v1417 = vadd.f32 %v1281, %v1416
    %v1418 = vpop.f32.mrb[0].mxu0
    %1419 = vdwg.mxu0
    %v1420 = vmax.f32 %v1414, 0.0
    %v1421 = vmax.f32 %v1417, 0.0
    %v1422 = vpack.c.bf16 %v1421, %v1420
    %v1423 = vld [vmem:[#allocation6] sm:$0xf]
    %v1424 = vld [vmem:[#allocation6 + $0x4] sm:$0xf]
    %v1425 = vld [vmem:[#allocation6 + $0x8] sm:$0xf]
    %v1426 = vld [vmem:[#allocation6 + $0xc] sm:$0xf]
    %v1427 = vld [vmem:[#allocation6 + $0x10] sm:$0xf]
    %v1428 = vld [vmem:[#allocation6 + $0x14] sm:$0xf]
    %v1429 = vld [vmem:[#allocation6 + $0x18] sm:$0xf]
    %v1430 = vld [vmem:[#allocation6 + $0x1c] sm:$0xf]
    %v1431 = vld [vmem:[#allocation6 + $0x20] sm:$0xf]
    %v1432 = vld [vmem:[#allocation6 + $0x24] sm:$0xf]
    %v1433 = vld [vmem:[#allocation6 + $0x28] sm:$0xf]
    %v1434 = vld [vmem:[#allocation6 + $0x2c] sm:$0xf]
    %v1435 = vld [vmem:[#allocation6 + $0x30] sm:$0xf]
    %v1436 = vld [vmem:[#allocation6 + $0x34] sm:$0xf]
    %v1437 = vld [vmem:[#allocation6 + $0x38] sm:$0xf]
    %v1438 = vld [vmem:[#allocation6 + $0x3c] sm:$0xf]
    %v1439 = vld [vmem:[%s6] sm:$0x1]
    %v1441 = vlaneseq
    %v1442 = vshrl.u32 %v1441, 7
    %v1443 = vsub.s32 0, %v1442
    %v1444 = vrot.slane %v1439, %v1443
    %v1462 = vunpack.c.l.b16 %v1423
    %v1463 = vunpack.c.l.b16 %v1424
    %v1464 = vunpack.c.l.b16 %v1425
    %v1465 = vunpack.c.l.b16 %v1426
    %v1466 = vunpack.c.l.b16 %v1427
    %v1467 = vunpack.c.l.b16 %v1428
    %v1468 = vunpack.c.l.b16 %v1429
    %v1469 = vunpack.c.l.b16 %v1430
    %v1470 = vunpack.c.l.b16 %v1431
    %v1471 = vunpack.c.l.b16 %v1432
    %v1472 = vunpack.c.l.b16 %v1433
    %v1473 = vunpack.c.l.b16 %v1434
    %v1474 = vunpack.c.l.b16 %v1435
    %v1475 = vunpack.c.l.b16 %v1436
    %v1476 = vunpack.c.l.b16 %v1437
    %v1477 = vunpack.c.l.b16 %v1438
    %v1478 = vpack.c.b16 %v1463, %v1462
    %v1479 = vpack.c.b16 %v1465, %v1464
    %v1480 = vpack.c.b16 %v1467, %v1466
    %v1481 = vpack.c.b16 %v1469, %v1468
    %v1482 = vpack.c.b16 %v1471, %v1470
    %v1483 = vpack.c.b16 %v1473, %v1472
    %v1484 = vpack.c.b16 %v1475, %v1474
    %v1485 = vpack.c.b16 %v1477, %v1476
    %1494 = vmatprep.subr.bf16.mxu0 0
    %1495 = vmatpush1.bf16.msra.mxu0 %v1478
    %1496 = vmatprep.subr.bf16.mxu0 0
    %1497 = vmatpush1.bf16.msra.mxu0 %v1479
    %1498 = vmatprep.subr.bf16.mxu0 0
    %1499 = vmatpush1.bf16.msra.mxu0 %v1480
    %1500 = vmatprep.subr.bf16.mxu0 0
    %1501 = vmatpush1.bf16.msra.mxu0 %v1481
    %1502 = vmatprep.subr.bf16.mxu0 0
    %1503 = vmatpush1.bf16.msra.mxu0 %v1482
    %1504 = vmatprep.subr.bf16.mxu0 0
    %1505 = vmatpush1.bf16.msra.mxu0 %v1483
    %1506 = vmatprep.subr.bf16.mxu0 0
    %1507 = vmatpush1.bf16.msra.mxu0 %v1484
    %1508 = vmatprep.subr.bf16.mxu0 0
    %1509 = vmatpush1.bf16.msra.mxu0 %v1485
    %1510 = vmatprep.subr.bf16.mxu0 0
    %1511 = vmatpush1.bf16.msra.mxu0 0
    %1512 = vmatprep.subr.bf16.mxu0 0
    %1513 = vmatpush1.bf16.msra.mxu0 0
    %1514 = vmatprep.subr.bf16.mxu0 0
    %1515 = vmatpush1.bf16.msra.mxu0 0
    %1516 = vmatprep.subr.bf16.mxu0 0
    %1517 = vmatpush1.bf16.msra.mxu0 0
    %1518 = vmatprep.subr.bf16.mxu0 0
    %1519 = vmatpush1.bf16.msra.mxu0 0
    %1520 = vmatprep.subr.bf16.mxu0 0
    %1521 = vmatpush1.bf16.msra.mxu0 0
    %1522 = vmatprep.subr.bf16.mxu0 0
    %1523 = vmatpush1.bf16.msra.mxu0 0
    %1524 = vmatprep.subr.bf16.mxu0 0
    %1525 = vmatpush1.bf16.msra.mxu0 0
    %1526 = vmatprep.mubr.bf16.mxu0 0
    %1527 = vmatmul.mubr.bf16.gmra.mrb[0].mxu0 %v1422
    %v1528 = vpop.f32.mrb[0].mxu0
    %v1529 = vadd.f32 %v1444, %v1528
    %v1530 = vpop.f32.mrb[0].mxu0
    %v1531 = vpop.f32.mrb[0].mxu0
    %v1532 = vadd.f32 %v1444, %v1531
    %v1533 = vpop.f32.mrb[0].mxu0
    %1534 = vdwg.mxu0
    %v1535 = vmax.f32 %v1529, 0.0
    %v1536 = vmax.f32 %v1532, 0.0
    %v1537 = vpack.c.bf16 %v1536, %v1535
    %v1538 = vld [vmem:[#allocation7] sm:$0xf]
    %v1539 = vld [vmem:[#allocation7 + $0x4] sm:$0xf]
    %v1540 = vld [vmem:[#allocation7 + $0x8] sm:$0xf]
    %v1541 = vld [vmem:[#allocation7 + $0xc] sm:$0xf]
    %v1542 = vld [vmem:[#allocation7 + $0x10] sm:$0xf]
    %v1543 = vld [vmem:[#allocation7 + $0x14] sm:$0xf]
    %v1544 = vld [vmem:[#allocation7 + $0x18] sm:$0xf]
    %v1545 = vld [vmem:[#allocation7 + $0x1c] sm:$0xf]
    %v1546 = vld [vmem:[#allocation7 + $0x20] sm:$0xf]
    %v1547 = vld [vmem:[#allocation7 + $0x24] sm:$0xf]
    %v1548 = vld [vmem:[#allocation7 + $0x28] sm:$0xf]
    %v1549 = vld [vmem:[#allocation7 + $0x2c] sm:$0xf]
    %v1550 = vld [vmem:[#allocation7 + $0x30] sm:$0xf]
    %v1551 = vld [vmem:[#allocation7 + $0x34] sm:$0xf]
    %v1552 = vld [vmem:[#allocation7 + $0x38] sm:$0xf]
    %v1553 = vld [vmem:[#allocation7 + $0x3c] sm:$0xf]
    %v1554 = vld [vmem:[%s8] sm:$0x1]
    %v1556 = vlaneseq
    %v1557 = vshrl.u32 %v1556, 7
    %v1558 = vsub.s32 0, %v1557
    %v1559 = vrot.slane %v1554, %v1558
    %v1577 = vunpack.c.l.b16 %v1538
    %v1578 = vunpack.c.l.b16 %v1539
    %v1579 = vunpack.c.l.b16 %v1540
    %v1580 = vunpack.c.l.b16 %v1541
    %v1581 = vunpack.c.l.b16 %v1542
    %v1582 = vunpack.c.l.b16 %v1543
    %v1583 = vunpack.c.l.b16 %v1544
    %v1584 = vunpack.c.l.b16 %v1545
    %v1585 = vunpack.c.l.b16 %v1546
    %v1586 = vunpack.c.l.b16 %v1547
    %v1587 = vunpack.c.l.b16 %v1548
    %v1588 = vunpack.c.l.b16 %v1549
    %v1589 = vunpack.c.l.b16 %v1550
    %v1590 = vunpack.c.l.b16 %v1551
    %v1591 = vunpack.c.l.b16 %v1552
    %v1592 = vunpack.c.l.b16 %v1553
    %v1593 = vpack.c.b16 %v1578, %v1577
    %v1594 = vpack.c.b16 %v1580, %v1579
    %v1595 = vpack.c.b16 %v1582, %v1581
    %v1596 = vpack.c.b16 %v1584, %v1583
    %v1597 = vpack.c.b16 %v1586, %v1585
    %v1598 = vpack.c.b16 %v1588, %v1587
    %v1599 = vpack.c.b16 %v1590, %v1589
    %v1600 = vpack.c.b16 %v1592, %v1591
    %1609 = vmatprep.subr.bf16.mxu0 0
    %1610 = vmatpush1.bf16.msra.mxu0 %v1593
    %1611 = vmatprep.subr.bf16.mxu0 0
    %1612 = vmatpush1.bf16.msra.mxu0 %v1594
    %1613 = vmatprep.subr.bf16.mxu0 0
    %1614 = vmatpush1.bf16.msra.mxu0 %v1595
    %1615 = vmatprep.subr.bf16.mxu0 0
    %1616 = vmatpush1.bf16.msra.mxu0 %v1596
    %1617 = vmatprep.subr.bf16.mxu0 0
    %1618 = vmatpush1.bf16.msra.mxu0 %v1597
    %1619 = vmatprep.subr.bf16.mxu0 0
    %1620 = vmatpush1.bf16.msra.mxu0 %v1598
    %1621 = vmatprep.subr.bf16.mxu0 0
    %1622 = vmatpush1.bf16.msra.mxu0 %v1599
    %1623 = vmatprep.subr.bf16.mxu0 0
    %1624 = vmatpush1.bf16.msra.mxu0 %v1600
    %1625 = vmatprep.subr.bf16.mxu0 0
    %1626 = vmatpush1.bf16.msra.mxu0 0
    %1627 = vmatprep.subr.bf16.mxu0 0
    %1628 = vmatpush1.bf16.msra.mxu0 0
    %1629 = vmatprep.subr.bf16.mxu0 0
    %1630 = vmatpush1.bf16.msra.mxu0 0
    %1631 = vmatprep.subr.bf16.mxu0 0
    %1632 = vmatpush1.bf16.msra.mxu0 0
    %1633 = vmatprep.subr.bf16.mxu0 0
    %1634 = vmatpush1.bf16.msra.mxu0 0
    %1635 = vmatprep.subr.bf16.mxu0 0
    %1636 = vmatpush1.bf16.msra.mxu0 0
    %1637 = vmatprep.subr.bf16.mxu0 0
    %1638 = vmatpush1.bf16.msra.mxu0 0
    %1639 = vmatprep.subr.bf16.mxu0 0
    %1640 = vmatpush1.bf16.msra.mxu0 0
    %1641 = vmatprep.mubr.bf16.mxu0 0
    %1642 = vmatmul.mubr.bf16.gmra.mrb[0].mxu0 %v1537
    %v1643 = vpop.f32.mrb[0].mxu0
    %v1644 = vadd.f32 %v1559, %v1643
    %v1645 = vpop.f32.mrb[0].mxu0
    %v1646 = vpop.f32.mrb[0].mxu0
    %v1647 = vadd.f32 %v1559, %v1646
    %v1648 = vpop.f32.mrb[0].mxu0
    %1649 = vdwg.mxu0
    %1650 = vst [vmem:[%s9] sm:$0xff] %v1644
    %1651 = vst [vmem:[%s9 + $0x8] sm:$0xff] %v1647
    // Predicated region
    $region54: #{net_forward_prepared.1} parent=1 // pred_check
      _
    $region55: #{net_forward_prepared.1} parent=1 // pred_check_branch
      %1653 = sbr.rel (0) target = $region57
    $region56: #{net_forward_prepared.1} parent=1 // pred_region
      _
    $region57: #{net_forward_prepared.1} parent=1 // pred_fallthru
      _
    // Predicated region
    $region58: #{net_forward_prepared.1} parent=1 // pred_check
      _
    $region59: #{net_forward_prepared.1} parent=1 // pred_check_branch
      %1655 = sbr.rel (0) target = $region61
    $region60: #{net_forward_prepared.1} parent=1 // pred_region
      _
    $region61: #{net_forward_prepared.1} parent=1 // pred_fallthru
      _
    %1656 = vsyncpa [#allocation3], 1
    %1657 = vsyncpa [#allocation5], 1
    %1658 = vsyncpa [#allocation8], 1

</llo_original>
